<compile_context>
chip_gen: v7x
topology: tpu7x:2x2x1
jax: 0.10.0
libtpu: 0.0.40
codegen_flags: <defaults>
</compile_context>

<pallas_src>
import functools

import jax
import jax.numpy as jnp
from jax.experimental import pallas as pl
from jax.experimental.pallas import tpu as pltpu

# ----------------------------- model dims ----------------------------------
B = 2            # batch (b_size)
T = 8            # tokens per sentence (seq len)
C = 8            # max characters per token (batch_to_ids width)
V_CHAR = 64      # character vocabulary size
D_CHAR = 16      # character embedding dim  (C * D_CHAR = 128 = one lane width)
KW = 3           # char-CNN filter width
N_FILT = 64      # char-CNN output filters (real)
FP = 128         # filters padded to one full lane width
EMB_DIM = 32     # emb_dimension (ELMo representation dim)
P = C - KW + 1   # conv window positions (= 6)
OUT_PAD = 128    # lane-dense padded output width
ROW_GRANULE = 16 # bf16 sublane multiple for row padding / tiling
MAX_ROW_TILE = 1024


# ------------------------------ Pallas kernel -------------------------------
def elmo_encoder_kernel(ids_ref,            # [tile, C]        int32 char ids
                        rexp_ref,           # [C, C*V]         f32 lane-expansion matrix
                        wce_ref, bce_ref,   # [C*V, P*FP] bf16, [1, P*FP] f32 (emb ∘ Toeplitz conv)
                        wtg_ref, btg_ref,   # [FP, 2FP]   bf16, [1, 2FP]  f32 (transform||gate)
                        wp_ref, bp_ref,     # [FP, 128]   bf16, [1, 128]  f32 (padded projection)
                        out_ref):           # [tile, 128] bf16
    # --- fused char-embedding lookup (all on MXU / whole-vreg VPU) ----------
    # rep[n, j] = ids[n, j // V_CHAR]  via a tiny matmul against rexp.
    ids = ids_ref[...].astype(jnp.float32)                              # [tile, C]
    rep = jnp.dot(ids, rexp_ref[...], preferred_element_type=jnp.float32)  # [tile, C*V]
    col = jax.lax.broadcasted_iota(jnp.int32, rep.shape, 1)
    col = (col & (V_CHAR - 1)).astype(jnp.float32)                      # j % V_CHAR
    onehot = (rep == col).astype(jnp.bfloat16)                          # [tile, C*V]

    # --- char-CNN: ALL window positions in one matmul against the fused
    #     (block-diag embedding @ block-Toeplitz conv) weight, then ReLU.
    s = jnp.dot(onehot, wce_ref[...], preferred_element_type=jnp.float32) + bce_ref[...]
    s = jnp.maximum(s, 0.0)                                             # [tile, P*FP]

    # --- max-pool over P=6 positions: full-vreg slices, depth-3 tree.
    h01 = jnp.maximum(s[:, 0 * FP:1 * FP], s[:, 1 * FP:2 * FP])
    h23 = jnp.maximum(s[:, 2 * FP:3 * FP], s[:, 3 * FP:4 * FP])
    h45 = jnp.maximum(s[:, 4 * FP:5 * FP], s[:, 5 * FP:6 * FP])
    h = jnp.maximum(jnp.maximum(h01, h23), h45)                         # [tile, FP]

    # --- highway layer: transform and gate fused into one [FP, 2FP] matmul.
    tg = jnp.dot(h.astype(jnp.bfloat16), wtg_ref[...],
                 preferred_element_type=jnp.float32) + btg_ref[...]
    z = jnp.maximum(tg[:, :FP], 0.0)
    g = jax.nn.sigmoid(tg[:, FP:])
    h = g * z + (1.0 - g) * h                                           # f32, whole-vreg

    # --- projection, padded to 128 lanes -> unmasked bf16 stores.
    out = jnp.dot(h.astype(jnp.bfloat16), wp_ref[...],
                  preferred_element_type=jnp.float32) + bp_ref[...]
    out_ref[...] = out.astype(out_ref.dtype)


# ------------------------------- wrapper ------------------------------------
def _round_up(x, m):
    return (x + m - 1) // m * m


@functools.partial(jax.jit, static_argnames=("max_row_tile",))
def elmo_word_level(char_ids, packed, *, max_row_tile=MAX_ROW_TILE):
    """char_ids: int32 [B, T, C]  ->  float32 [B, T, EMB_DIM]."""
    rexp, wce, bce, wtg, btg, wp_pad, bp_pad = packed
    b, t, c = char_ids.shape
    n = b * t
    ids = char_ids.reshape(n, c).astype(jnp.int32)                       # [N, C], ~32 B/row

    # Row padding to the 16-row granule; split the grid into >= 2 steps when
    # there is more than one granule of rows so v7x's two TCs both get work.
    n_pad = _round_up(n, ROW_GRANULE)
    if n_pad > ROW_GRANULE:
        row_tile = min(max_row_tile, _round_up(pl.cdiv(n_pad, 2), ROW_GRANULE))
    else:
        row_tile = n_pad
    n_pad = _round_up(n_pad, row_tile)
    ids = jnp.pad(ids, ((0, n_pad - n), (0, 0)))

    full = lambda a: pl.BlockSpec(a.shape, lambda i: (0,) * a.ndim)

    out = pl.pallas_call(
        elmo_encoder_kernel,
        out_shape=jax.ShapeDtypeStruct((n_pad, OUT_PAD), jnp.bfloat16),
        grid_spec=pltpu.PrefetchScalarGridSpec(
            num_scalar_prefetch=0,
            grid=(n_pad // row_tile,),
            in_specs=[
                pl.BlockSpec((row_tile, c), lambda i: (i, 0)),
                full(rexp),
                full(wce), full(bce),
                full(wtg), full(btg),
                full(wp_pad), full(bp_pad),
            ],
            out_specs=pl.BlockSpec((row_tile, OUT_PAD), lambda i: (i, 0)),
        ),
        compiler_params=pltpu.CompilerParams(
            dimension_semantics=("parallel",),
            vmem_limit_bytes=32 * 1024 * 1024),
    )(ids, rexp, wce, bce, wtg, btg, wp_pad, bp_pad)

    # Padded rows / padded lanes sliced off here (kernel computes garbage on
    # zero-padded rows by design; never fed back).  Slice + f32 cast fuse in XLA.
    return out[:n, :EMB_DIM].astype(jnp.float32).reshape(b, t, EMB_DIM)


# ------------------------- deterministic parameters --------------------------
def init_params(key):
    ks = jax.random.split(key, 6)
    kd = KW * D_CHAR
    char_table = jax.random.normal(ks[0], (V_CHAR, D_CHAR), jnp.float32) * 0.1
    wc = jax.random.normal(ks[1], (kd, N_FILT), jnp.float32) * (1.0 / kd ** 0.5)
    bc = jnp.zeros((1, N_FILT), jnp.float32)
    wt = jax.random.normal(ks[2], (N_FILT, N_FILT), jnp.float32) * (1.0 / N_FILT ** 0.5)
    bt = jnp.zeros((1, N_FILT), jnp.float32)
    wg = jax.random.normal(ks[3], (N_FILT, N_FILT), jnp.float32) * (1.0 / N_FILT ** 0.5)
    bg = jnp.full((1, N_FILT), -1.0, jnp.float32)   # bias gate toward carry
    wp = jax.random.normal(ks[4], (N_FILT, EMB_DIM), jnp.float32) * (1.0 / N_FILT ** 0.5)
    bp = jnp.zeros((1, EMB_DIM), jnp.float32)
    # NOTE: `self.context = Linear(emb_dimension, 1, bias=False)` is NOT used
    # in forward() — intentionally not materialized here.
    return (char_table, wc, bc, wt, bt, wg, bg, wp, bp)


def pack_params(params):
    """Pack weights into the fused / lane-dense layouts the kernel expects."""
    char_table, wc, bc, wt, bt, wg, bg, wp, bp = params

    # Block-Toeplitz conv weight over flattened char embeddings; filters
    # padded 64 -> 128 per window position so every slice is whole-vreg.
    wc_full = jnp.zeros((C * D_CHAR, P * FP), jnp.float32)
    bc_full = jnp.zeros((1, P * FP), jnp.float32)
    for p in range(P):
        for k in range(KW):
            wc_full = wc_full.at[(p + k) * D_CHAR:(p + k + 1) * D_CHAR,
                                 p * FP:p * FP + N_FILT].set(
                wc[k * D_CHAR:(k + 1) * D_CHAR, :])
        bc_full = bc_full.at[:, p * FP:p * FP + N_FILT].set(bc)

    # Fold the (block-diagonal) char-embedding table into the conv weight so
    # the kernel's one-hot matmul does lookup + conv in one MXU pass:
    #   onehot[n, c*V + v] @ wce  ==  (char_emb_flat @ wc_full)[n]
    emb_blockdiag = jnp.zeros((C * V_CHAR, C * D_CHAR), jnp.float32)
    for c in range(C):
        emb_blockdiag = emb_blockdiag.at[c * V_CHAR:(c + 1) * V_CHAR,
                                         c * D_CHAR:(c + 1) * D_CHAR].set(char_table)
    wce = emb_blockdiag @ wc_full                                   # [C*V, P*FP]

    # Lane-expansion matrix: (ids @ rexp)[n, j] == ids[n, j // V_CHAR]
    rexp = jnp.repeat(jnp.eye(C, dtype=jnp.float32), V_CHAR, axis=1)  # [C, C*V]

    # Highway transform||gate, rows and columns padded to FP (zeros keep the
    # padded lanes identically zero through the blend).
    wtg = jnp.zeros((FP, 2 * FP), jnp.float32)
    wtg = wtg.at[:N_FILT, :N_FILT].set(wt)
    wtg = wtg.at[:N_FILT, FP:FP + N_FILT].set(wg)
    btg = jnp.zeros((1, 2 * FP), jnp.float32)
    btg = btg.at[:, :N_FILT].set(bt)
    btg = btg.at[:, FP:FP + N_FILT].set(bg)

    # Projection, rows padded to FP, columns padded to one lane width.
    wp_pad = jnp.zeros((FP, OUT_PAD), jnp.float32)
    wp_pad = wp_pad.at[:N_FILT, :EMB_DIM].set(wp)
    bp_pad = jnp.zeros((1, OUT_PAD), jnp.float32)
    bp_pad = bp_pad.at[:, :EMB_DIM].set(bp)

    return (rexp,
            wce.astype(jnp.bfloat16), bc_full,
            wtg.astype(jnp.bfloat16), btg,
            wp_pad.astype(jnp.bfloat16), bp_pad)


if __name__ == "__main__":
    key = jax.random.PRNGKey(0)
    k_param, k_ids = jax.random.split(key)

    params = init_params(k_param)
    packed = pack_params(params)

    # "batch_to_ids(sentences)" stand-in: deterministic character ids.
    char_ids = jax.random.randint(k_ids, (B, T, C), minval=0, maxval=V_CHAR,
                                  dtype=jnp.int32)

    job_rep = elmo_word_level(char_ids, packed)
    jax.block_until_ready(job_rep)

    assert job_rep.shape == (B, T, EMB_DIM), job_rep.shape
    assert job_rep.dtype == jnp.float32
    assert bool(jnp.all(jnp.isfinite(job_rep)))
    print("KERNEL_OK")
</pallas_src>

<mosaic_0001>
module attributes {stable_mosaic.version = 11 : i64} {
  func.func @elmo_encoder_kernel(%arg0: i32, %arg1: memref<16x8xi32, #tpu.memory_space<vmem>>, %arg2: memref<8x512xf32, #tpu.memory_space<vmem>>, %arg3: memref<512x768xbf16, #tpu.memory_space<vmem>>, %arg4: memref<1x768xf32, #tpu.memory_space<vmem>>, %arg5: memref<128x256xbf16, #tpu.memory_space<vmem>>, %arg6: memref<1x256xf32, #tpu.memory_space<vmem>>, %arg7: memref<128x128xbf16, #tpu.memory_space<vmem>>, %arg8: memref<1x128xf32, #tpu.memory_space<vmem>>, %arg9: memref<16x128xbf16, #tpu.memory_space<vmem>>) attributes {dimension_semantics = [#tpu.dimension_semantics<parallel>], iteration_bounds = array<i64: 1>, scalar_prefetch = 0 : i64, scratch_operands = 0 : i64, tpu.core_type = #tpu.core_type<tc>, window_params = [{transform_indices = @transform_0, window_bounds = array<i64: 16, 8>}, {pipeline_mode = #tpu.pipeline_mode<synchronous>, transform_indices = @transform_1, window_bounds = array<i64: 8, 512>}, {pipeline_mode = #tpu.pipeline_mode<synchronous>, transform_indices = @transform_2, window_bounds = array<i64: 512, 768>}, {pipeline_mode = #tpu.pipeline_mode<synchronous>, transform_indices = @transform_3, window_bounds = array<i64: 1, 768>}, {pipeline_mode = #tpu.pipeline_mode<synchronous>, transform_indices = @transform_4, window_bounds = array<i64: 128, 256>}, {pipeline_mode = #tpu.pipeline_mode<synchronous>, transform_indices = @transform_5, window_bounds = array<i64: 1, 256>}, {pipeline_mode = #tpu.pipeline_mode<synchronous>, transform_indices = @transform_6, window_bounds = array<i64: 128, 128>}, {pipeline_mode = #tpu.pipeline_mode<synchronous>, transform_indices = @transform_7, window_bounds = array<i64: 1, 128>}, {transform_indices = @transform_8, window_bounds = array<i64: 16, 128>}]} {
    %c0 = arith.constant 0 : index
    %c0_0 = arith.constant 0 : index
    %0 = vector.load %arg1[%c0, %c0_0] : memref<16x8xi32, #tpu.memory_space<vmem>>, vector<16x8xi32>
    %1 = arith.sitofp %0 : vector<16x8xi32> to vector<16x8xf32>
    %c0_1 = arith.constant 0 : index
    %c0_2 = arith.constant 0 : index
    %2 = vector.load %arg2[%c0_1, %c0_2] : memref<8x512xf32, #tpu.memory_space<vmem>>, vector<8x512xf32>
    %cst = arith.constant dense<0.000000e+00> : vector<16x512xf32>
    %3 = tpu.matmul %1, %2, %cst {dimension_numbers = #tpu.dot_dimension_numbers<[1], [0], [0], [1], [0, 0, 1, 1], [], []>} : vector<16x8xf32>, vector<8x512xf32>, vector<16x512xf32> -> vector<16x512xf32>
    %4 = tpu.iota {dimensions = array<i32: 1>} : vector<16x512xi32>
    %c63_i32 = arith.constant 63 : i32
    %5 = vector.broadcast %c63_i32 : i32 to vector<16x512xi32>
    %6 = arith.andi %4, %5 : vector<16x512xi32>
    %7 = arith.sitofp %6 : vector<16x512xi32> to vector<16x512xf32>
    %8 = arith.cmpf oeq, %3, %7 : vector<16x512xf32>
    %9 = arith.extui %8 : vector<16x512xi1> to vector<16x512xi32>
    %10 = arith.sitofp %9 : vector<16x512xi32> to vector<16x512xf32>
    %11 = arith.truncf %10 : vector<16x512xf32> to vector<16x512xbf16>
    %c0_3 = arith.constant 0 : index
    %c0_4 = arith.constant 0 : index
    %12 = vector.load %arg3[%c0_3, %c0_4] : memref<512x768xbf16, #tpu.memory_space<vmem>>, vector<512x768xbf16>
    %cst_5 = arith.constant dense<0.000000e+00> : vector<16x768xf32>
    %13 = tpu.matmul %11, %12, %cst_5 {dimension_numbers = #tpu.dot_dimension_numbers<[1], [0], [0], [1], [0, 0, 1, 1], [], []>} : vector<16x512xbf16>, vector<512x768xbf16>, vector<16x768xf32> -> vector<16x768xf32>
    %c0_6 = arith.constant 0 : index
    %c0_7 = arith.constant 0 : index
    %14 = vector.load %arg4[%c0_6, %c0_7] : memref<1x768xf32, #tpu.memory_space<vmem>>, vector<1x768xf32>
    %15 = vector.broadcast %14 : vector<1x768xf32> to vector<16x768xf32>
    %16 = arith.addf %13, %15 : vector<16x768xf32>
    %cst_8 = arith.constant 0.000000e+00 : f32
    %17 = vector.broadcast %cst_8 : f32 to vector<16x768xf32>
    %18 = arith.maximumf %16, %17 : vector<16x768xf32>
    %19 = vector.extract_strided_slice %18 {offsets = [0, 0], sizes = [16, 128], strides = [1, 1]} : vector<16x768xf32> to vector<16x128xf32>
    %20 = vector.extract_strided_slice %18 {offsets = [0, 128], sizes = [16, 128], strides = [1, 1]} : vector<16x768xf32> to vector<16x128xf32>
    %21 = arith.maximumf %19, %20 : vector<16x128xf32>
    %22 = vector.extract_strided_slice %18 {offsets = [0, 256], sizes = [16, 128], strides = [1, 1]} : vector<16x768xf32> to vector<16x128xf32>
    %23 = vector.extract_strided_slice %18 {offsets = [0, 384], sizes = [16, 128], strides = [1, 1]} : vector<16x768xf32> to vector<16x128xf32>
    %24 = arith.maximumf %22, %23 : vector<16x128xf32>
    %25 = vector.extract_strided_slice %18 {offsets = [0, 512], sizes = [16, 128], strides = [1, 1]} : vector<16x768xf32> to vector<16x128xf32>
    %26 = vector.extract_strided_slice %18 {offsets = [0, 640], sizes = [16, 128], strides = [1, 1]} : vector<16x768xf32> to vector<16x128xf32>
    %27 = arith.maximumf %25, %26 : vector<16x128xf32>
    %28 = arith.maximumf %21, %24 : vector<16x128xf32>
    %29 = arith.maximumf %28, %27 : vector<16x128xf32>
    %30 = arith.truncf %29 : vector<16x128xf32> to vector<16x128xbf16>
    %c0_9 = arith.constant 0 : index
    %c0_10 = arith.constant 0 : index
    %31 = vector.load %arg5[%c0_9, %c0_10] : memref<128x256xbf16, #tpu.memory_space<vmem>>, vector<128x256xbf16>
    %cst_11 = arith.constant dense<0.000000e+00> : vector<16x256xf32>
    %32 = tpu.matmul %30, %31, %cst_11 {dimension_numbers = #tpu.dot_dimension_numbers<[1], [0], [0], [1], [0, 0, 1, 1], [], []>} : vector<16x128xbf16>, vector<128x256xbf16>, vector<16x256xf32> -> vector<16x256xf32>
    %c0_12 = arith.constant 0 : index
    %c0_13 = arith.constant 0 : index
    %33 = vector.load %arg6[%c0_12, %c0_13] : memref<1x256xf32, #tpu.memory_space<vmem>>, vector<1x256xf32>
    %34 = vector.broadcast %33 : vector<1x256xf32> to vector<16x256xf32>
    %35 = arith.addf %32, %34 : vector<16x256xf32>
    %36 = vector.extract_strided_slice %35 {offsets = [0, 0], sizes = [16, 128], strides = [1, 1]} : vector<16x256xf32> to vector<16x128xf32>
    %cst_14 = arith.constant 0.000000e+00 : f32
    %37 = vector.broadcast %cst_14 : f32 to vector<16x128xf32>
    %38 = arith.maximumf %36, %37 : vector<16x128xf32>
    %39 = vector.extract_strided_slice %35 {offsets = [0, 128], sizes = [16, 128], strides = [1, 1]} : vector<16x256xf32> to vector<16x128xf32>
    %40 = arith.negf %39 : vector<16x128xf32>
    %41 = math.exp %40 : vector<16x128xf32>
    %cst_15 = arith.constant 1.000000e+00 : f32
    %42 = vector.broadcast %cst_15 : f32 to vector<16x128xf32>
    %43 = arith.addf %42, %41 : vector<16x128xf32>
    %44 = arith.divf %42, %43 : vector<16x128xf32>
    %45 = arith.mulf %44, %38 : vector<16x128xf32>
    %cst_16 = arith.constant 1.000000e+00 : f32
    %46 = vector.broadcast %cst_16 : f32 to vector<16x128xf32>
    %47 = arith.subf %46, %44 : vector<16x128xf32>
    %48 = arith.mulf %47, %29 : vector<16x128xf32>
    %49 = arith.addf %45, %48 : vector<16x128xf32>
    %50 = arith.truncf %49 : vector<16x128xf32> to vector<16x128xbf16>
    %c0_17 = arith.constant 0 : index
    %c0_18 = arith.constant 0 : index
    %51 = vector.load %arg7[%c0_17, %c0_18] : memref<128x128xbf16, #tpu.memory_space<vmem>>, vector<128x128xbf16>
    %cst_19 = arith.constant dense<0.000000e+00> : vector<16x128xf32>
    %52 = tpu.matmul %50, %51, %cst_19 {dimension_numbers = #tpu.dot_dimension_numbers<[1], [0], [0], [1], [0, 0, 1, 1], [], []>} : vector<16x128xbf16>, vector<128x128xbf16>, vector<16x128xf32> -> vector<16x128xf32>
    %c0_20 = arith.constant 0 : index
    %c0_21 = arith.constant 0 : index
    %53 = vector.load %arg8[%c0_20, %c0_21] : memref<1x128xf32, #tpu.memory_space<vmem>>, vector<1x128xf32>
    %54 = vector.broadcast %53 : vector<1x128xf32> to vector<16x128xf32>
    %55 = arith.addf %52, %54 : vector<16x128xf32>
    %56 = arith.truncf %55 : vector<16x128xf32> to vector<16x128xbf16>
    %c0_22 = arith.constant 0 : index
    %c0_23 = arith.constant 0 : index
    %57 = vector.load %arg9[%c0_22, %c0_23] : memref<16x128xbf16, #tpu.memory_space<vmem>>, vector<16x128xbf16>
    tpu.vector_store %arg9[%c0_22, %c0_23], %56 {strides = array<i32>} : memref<16x128xbf16, #tpu.memory_space<vmem>>, vector<16x128xbf16>,
    return
  }
  func.func @transform_0(%arg0: i32) -> (i32, i32) {
    %c0_i32 = arith.constant 0 : i32
    %c0_i32_0 = arith.constant 0 : i32
    return %arg0, %c0_i32 : i32, i32
  }
  func.func @transform_1(%arg0: i32) -> (i32, i32) {
    %c0_i32 = arith.constant 0 : i32
    %c0_i32_0 = arith.constant 0 : i32
    %c0_i32_1 = arith.constant 0 : i32
    return %c0_i32, %c0_i32_0 : i32, i32
  }
  func.func @transform_2(%arg0: i32) -> (i32, i32) {
    %c0_i32 = arith.constant 0 : i32
    %c0_i32_0 = arith.constant 0 : i32
    %c0_i32_1 = arith.constant 0 : i32
    return %c0_i32, %c0_i32_0 : i32, i32
  }
  func.func @transform_3(%arg0: i32) -> (i32, i32) {
    %c0_i32 = arith.constant 0 : i32
    %c0_i32_0 = arith.constant 0 : i32
    %c0_i32_1 = arith.constant 0 : i32
    return %c0_i32, %c0_i32_0 : i32, i32
  }
  func.func @transform_4(%arg0: i32) -> (i32, i32) {
    %c0_i32 = arith.constant 0 : i32
    %c0_i32_0 = arith.constant 0 : i32
    %c0_i32_1 = arith.constant 0 : i32
    return %c0_i32, %c0_i32_0 : i32, i32
  }
  func.func @transform_5(%arg0: i32) -> (i32, i32) {
    %c0_i32 = arith.constant 0 : i32
    %c0_i32_0 = arith.constant 0 : i32
    %c0_i32_1 = arith.constant 0 : i32
    return %c0_i32, %c0_i32_0 : i32, i32
  }
  func.func @transform_6(%arg0: i32) -> (i32, i32) {
    %c0_i32 = arith.constant 0 : i32
    %c0_i32_0 = arith.constant 0 : i32
    %c0_i32_1 = arith.constant 0 : i32
    return %c0_i32, %c0_i32_0 : i32, i32
  }
  func.func @transform_7(%arg0: i32) -> (i32, i32) {
    %c0_i32 = arith.constant 0 : i32
    %c0_i32_0 = arith.constant 0 : i32
    %c0_i32_1 = arith.constant 0 : i32
    return %c0_i32, %c0_i32_0 : i32, i32
  }
  func.func @transform_8(%arg0: i32) -> (i32, i32) {
    %c0_i32 = arith.constant 0 : i32
    %c0_i32_0 = arith.constant 0 : i32
    return %arg0, %c0_i32 : i32, i32
  }
}

</mosaic_0001>

<llo_original>
// kernel: elmo_word_level.1
$region0: #{elmo_word_level.1}
  #allocation0 [shape = 'u32[]', space=smem, size = 0x4, offset = 0x4, fixed_abs, tag = 'smem constant byte address 0x4 - core index']
  #allocation1 [shape = 'u32[144,128]{1,0:T(1,128)}', space=vmem, size = 0x12000, scoped, tag = 'internal scratch']
  %s0 = inlined_call_operand.hbm [shape: s32[16,8], index: 0, kind: input, shape index: {}]
  %s1 = inlined_call_operand.hbm [shape: f32[8,512], index: 1, kind: input, shape index: {}]
  %s2 = inlined_call_operand.hbm [shape: bf16[512,768], index: 2, kind: input, shape index: {}]
  %s3 = inlined_call_operand.vmem [shape: f32[1,768], index: 3, kind: input, shape index: {}]
  %s4 = inlined_call_operand.hbm [shape: bf16[128,256], index: 4, kind: input, shape index: {}]
  %s5 = inlined_call_operand.vmem [shape: f32[1,256], index: 5, kind: input, shape index: {}]
  %s6 = inlined_call_operand.hbm [shape: bf16[128,128], index: 6, kind: input, shape index: {}]
  %s7 = inlined_call_operand.vmem [shape: f32[1,128], index: 7, kind: input, shape index: {}]
  %s8 = inlined_call_operand.vmem [shape: bf16[16,128], index: 8, kind: output, shape index: {}]
  %s9 = sld [smem:[#allocation0]]
  $region62: #{elmo_word_level.1} parent=0
    _
  %s11 = ssub.s32 1, %s9
  %s12 = scalar_select 0, %s11, %s9
  $region1: #{elmo_word_level.1} parent=0
    #allocation2 [shape = 'u8[8192]{0}', space=vmem, size = 0x2000, scoped, tag = 'input window, operand 0, single buffered']
    #allocation3 [shape = 's32[1]{0}', space=sflag, size = 0x4, scoped, tag = 'scoped memory for elmo_word_level.1']
    #allocation4 [shape = 'u8[16384]{0}', space=vmem, size = 0x4000, scoped, tag = 'input window, operand 1, single buffered']
    #allocation5 [shape = 's32[1]{0}', space=sflag, size = 0x4, scoped, tag = 'scoped memory for elmo_word_level.1']
    #allocation6 [shape = 'u8[786432]{0}', space=vmem, size = 0xc0000, scoped, tag = 'input window, operand 2, single buffered']
    #allocation7 [shape = 'u8[65536]{0}', space=vmem, size = 0x10000, scoped, tag = 'input window, operand 4, single buffered']
    #allocation8 [shape = 's32[1]{0}', space=sflag, size = 0x4, scoped, tag = 'scoped memory for elmo_word_level.1']
    #allocation9 [shape = 'u8[32768]{0}', space=vmem, size = 0x8000, scoped, tag = 'input window, operand 6, single buffered']
    %13 = vsyncpa [#allocation3], 0
    %14 = vsyncpa [#allocation5], 0
    %15 = vsyncpa [#allocation8], 0
    // Predicated region
    $region2: #{elmo_word_level.1} parent=1 // pred_check
      _
    $region3: #{elmo_word_level.1} parent=1 // pred_check_branch
      %17 = sbr.rel (0) target = $region5
    $region4: #{elmo_word_level.1} parent=1 // pred_region
      %s19 = ssub.s32 256, 256
      %20 = vsyncadd [#allocation3], %s19
      %s21 = sshll.u32 [#allocation2], 4
      %s22 = int_to_ptr.vmem [resolvable:$true] %s21
      %27 = dma.hbm_to_vmem [thread:$0]  %s0, 256, %s22, [#allocation3], 128, 128, 8
    $region5: #{elmo_word_level.1} parent=1 // pred_fallthru
      _
    // Predicated region
    $region6: #{elmo_word_level.1} parent=1 // pred_check
      _
    $region7: #{elmo_word_level.1} parent=1 // pred_check_branch
      %29 = sbr.rel (0) target = $region9
    $region8: #{elmo_word_level.1} parent=1 // pred_region
      %s31 = ssub.s32 512, 512
      %32 = vsyncadd [#allocation5], %s31
      %s34 = sshll.u32 [#allocation4], 4
      %s35 = int_to_ptr.vmem [resolvable:$true] %s34
      %37 = dma.hbm_to_vmem [thread:$0]  %s1, 512, %s35, [#allocation5]
    $region9: #{elmo_word_level.1} parent=1 // pred_fallthru
      _
    // Predicated region
    $region10: #{elmo_word_level.1} parent=1 // pred_check
      _
    $region11: #{elmo_word_level.1} parent=1 // pred_check_branch
      %39 = sbr.rel (0) target = $region13
    $region12: #{elmo_word_level.1} parent=1 // pred_region
      %s41 = ssub.s32 24576, 24576
      %42 = vsyncadd [#allocation5], %s41
      %s43 = sshll.u32 [#allocation6], 4
      %s44 = int_to_ptr.vmem [resolvable:$true] %s43
      %49 = dma.hbm_to_vmem [thread:$0]  %s2, 24576, %s44, [#allocation5], 384, 384, 24
    $region13: #{elmo_word_level.1} parent=1 // pred_fallthru
      _
    // Predicated region
    $region14: #{elmo_word_level.1} parent=1 // pred_check
      _
    $region15: #{elmo_word_level.1} parent=1 // pred_check_branch
      %51 = sbr.rel (0) target = $region17
    $region16: #{elmo_word_level.1} parent=1 // pred_region
      _
    $region17: #{elmo_word_level.1} parent=1 // pred_fallthru
      _
    // Predicated region
    $region18: #{elmo_word_level.1} parent=1 // pred_check
      _
    $region19: #{elmo_word_level.1} parent=1 // pred_check_branch
      %53 = sbr.rel (0) target = $region21
    $region20: #{elmo_word_level.1} parent=1 // pred_region
      %s55 = ssub.s32 2048, 2048
      %56 = vsyncadd [#allocation8], %s55
      %s57 = sshll.u32 [#allocation7], 4
      %s58 = int_to_ptr.vmem [resolvable:$true] %s57
      %63 = dma.hbm_to_vmem [thread:$0]  %s4, 2048, %s58, [#allocation8], 128, 128, 8
    $region21: #{elmo_word_level.1} parent=1 // pred_fallthru
      _
    // Predicated region
    $region22: #{elmo_word_level.1} parent=1 // pred_check
      _
    $region23: #{elmo_word_level.1} parent=1 // pred_check_branch
      %65 = sbr.rel (0) target = $region25
    $region24: #{elmo_word_level.1} parent=1 // pred_region
      _
    $region25: #{elmo_word_level.1} parent=1 // pred_fallthru
      _
    // Predicated region
    $region26: #{elmo_word_level.1} parent=1 // pred_check
      _
    $region27: #{elmo_word_level.1} parent=1 // pred_check_branch
      %67 = sbr.rel (0) target = $region29
    $region28: #{elmo_word_level.1} parent=1 // pred_region
      %s69 = ssub.s32 1024, 1024
      %70 = vsyncadd [#allocation8], %s69
      %s71 = sshll.u32 [#allocation9], 4
      %s72 = int_to_ptr.vmem [resolvable:$true] %s71
      %77 = dma.hbm_to_vmem [thread:$0]  %s6, 1024, %s72, [#allocation8], 64, 64, 4
    $region29: #{elmo_word_level.1} parent=1 // pred_fallthru
      _
    // Predicated region
    $region30: #{elmo_word_level.1} parent=1 // pred_check
      _
    $region31: #{elmo_word_level.1} parent=1 // pred_check_branch
      %79 = sbr.rel (0) target = $region33
    $region32: #{elmo_word_level.1} parent=1 // pred_region
      _
    $region33: #{elmo_word_level.1} parent=1 // pred_fallthru
      _
    // Predicated region
    $region34: #{elmo_word_level.1} parent=1 // pred_check
      _
    $region35: #{elmo_word_level.1} parent=1 // pred_check_branch
      %81 = sbr.rel (0) target = $region37
    $region36: #{elmo_word_level.1} parent=1 // pred_region
      %82 = dma.done [#allocation3], 256
    $region37: #{elmo_word_level.1} parent=1 // pred_fallthru
      _
    // Predicated region
    $region38: #{elmo_word_level.1} parent=1 // pred_check
      _
    $region39: #{elmo_word_level.1} parent=1 // pred_check_branch
      %84 = sbr.rel (0) target = $region41
    $region40: #{elmo_word_level.1} parent=1 // pred_region
      %85 = dma.done [#allocation5], 512
    $region41: #{elmo_word_level.1} parent=1 // pred_fallthru
      _
    // Predicated region
    $region42: #{elmo_word_level.1} parent=1 // pred_check
      _
    $region43: #{elmo_word_level.1} parent=1 // pred_check_branch
      %87 = sbr.rel (0) target = $region45
    $region44: #{elmo_word_level.1} parent=1 // pred_region
      %88 = dma.done [#allocation5], 24576
    $region45: #{elmo_word_level.1} parent=1 // pred_fallthru
      _
    // Predicated region
    $region46: #{elmo_word_level.1} parent=1 // pred_check
      _
    $region47: #{elmo_word_level.1} parent=1 // pred_check_branch
      %90 = sbr.rel (0) target = $region49
    $region48: #{elmo_word_level.1} parent=1 // pred_region
      %91 = dma.done [#allocation8], 2048
    $region49: #{elmo_word_level.1} parent=1 // pred_fallthru
      _
    // Predicated region
    $region50: #{elmo_word_level.1} parent=1 // pred_check
      _
    $region51: #{elmo_word_level.1} parent=1 // pred_check_branch
      %93 = sbr.rel (0) target = $region53
    $region52: #{elmo_word_level.1} parent=1 // pred_region
      %94 = dma.done [#allocation8], 1024
    $region53: #{elmo_word_level.1} parent=1 // pred_fallthru
      _
    %v96 = vld [vmem:[#allocation2] sm:$0xff]
    %v97 = vld [vmem:[#allocation2 + $0x8] sm:$0xff]
    %v98 = vcvt.s32.f32 %v96
    %v99 = vcvt.s32.f32 %v97
    %v100 = vld [vmem:[#allocation4] sm:$0xff]
    %v101 = vld [vmem:[#allocation4 + $0x8] sm:$0xff]
    %v102 = vld [vmem:[#allocation4 + $0x10] sm:$0xff]
    %v103 = vld [vmem:[#allocation4 + $0x18] sm:$0xff]
    %vm104 = vcmask 64512
    %v106 = vsel %vm104, %v98, 0
    %v109 = vsel %vm104, %v99, 0
    %111 = vmatprep.subr.mxu0 %v101
    %112 = vmatpush1.msra.mxu0 %v100
    %113 = vmatprep.subr.mxu0 0.0
    %114 = vmatpush1.msra.mxu0 0.0
    %115 = vmatprep.subr.mxu0 0.0
    %116 = vmatpush1.msra.mxu0 0.0
    %117 = vmatprep.subr.mxu0 0.0
    %118 = vmatpush1.msra.mxu0 0.0
    %119 = vmatprep.subr.mxu0 0.0
    %120 = vmatpush1.msra.mxu0 0.0
    %121 = vmatprep.subr.mxu0 0.0
    %122 = vmatpush1.msra.mxu0 0.0
    %123 = vmatprep.subr.mxu0 0.0
    %124 = vmatpush1.msra.mxu0 0.0
    %125 = vmatprep.subr.mxu0 0.0
    %126 = vmatpush1.msra.mxu0 0.0
    %127 = vmatprep.subr.mxu0 0.0
    %128 = vmatpush1.msra.mxu0 0.0
    %129 = vmatprep.subr.mxu0 0.0
    %130 = vmatpush1.msra.mxu0 0.0
    %131 = vmatprep.subr.mxu0 0.0
    %132 = vmatpush1.msra.mxu0 0.0
    %133 = vmatprep.subr.mxu0 0.0
    %134 = vmatpush1.msra.mxu0 0.0
    %135 = vmatprep.subr.mxu0 0.0
    %136 = vmatpush1.msra.mxu0 0.0
    %137 = vmatprep.subr.mxu0 0.0
    %138 = vmatpush1.msra.mxu0 0.0
    %139 = vmatprep.subr.mxu0 0.0
    %140 = vmatpush1.msra.mxu0 0.0
    %141 = vmatprep.subr.mxu0 0.0
    %142 = vmatpush1.msra.mxu0 0.0
    %143 = vmatprep.subr.mxu0 0.0
    %144 = vmatpush1.msra.mxu0 0.0
    %145 = vmatprep.subr.mxu0 0.0
    %146 = vmatpush1.msra.mxu0 0.0
    %147 = vmatprep.subr.mxu0 0.0
    %148 = vmatpush1.msra.mxu0 0.0
    %149 = vmatprep.subr.mxu0 0.0
    %150 = vmatpush1.msra.mxu0 0.0
    %151 = vmatprep.subr.mxu0 0.0
    %152 = vmatpush1.msra.mxu0 0.0
    %153 = vmatprep.subr.mxu0 0.0
    %154 = vmatpush1.msra.mxu0 0.0
    %155 = vmatprep.subr.mxu0 0.0
    %156 = vmatpush1.msra.mxu0 0.0
    %157 = vmatprep.subr.mxu0 0.0
    %158 = vmatpush1.msra.mxu0 0.0
    %159 = vmatprep.subr.mxu0 0.0
    %160 = vmatpush1.msra.mxu0 0.0
    %161 = vmatprep.subr.mxu0 0.0
    %162 = vmatpush1.msra.mxu0 0.0
    %163 = vmatprep.subr.mxu0 0.0
    %164 = vmatpush1.msra.mxu0 0.0
    %165 = vmatprep.subr.mxu0 0.0
    %166 = vmatpush1.msra.mxu0 0.0
    %167 = vmatprep.subr.mxu0 0.0
    %168 = vmatpush1.msra.mxu0 0.0
    %169 = vmatprep.subr.mxu0 0.0
    %170 = vmatpush1.msra.mxu0 0.0
    %171 = vmatprep.subr.mxu0 0.0
    %172 = vmatpush1.msra.mxu0 0.0
    %173 = vmatprep.subr.mxu0 0.0
    %174 = vmatpush1.msra.mxu0 0.0
    %175 = vmatprep.mubr.f32.mxu0 0.0
    %176 = vmatmul.mubr.f32.gmra.mrb[0].mxu0 %v106
    %v177 = vpop.f32.mrb[0].mxu0
    %v178 = vadd.f32 0.0, %v177
    %v179 = vpop.f32.mrb[0].mxu0
    %v180 = vadd.f32 0.0, %v179
    %181 = vmatprep.mubr.f32.mxu0 0.0
    %182 = vmatmul.mubr.f32.gmra.mrb[0].mxu0 %v109
    %v183 = vpop.f32.mrb[0].mxu0
    %v184 = vadd.f32 0.0, %v183
    %v185 = vpop.f32.mrb[0].mxu0
    %v186 = vadd.f32 0.0, %v185
    %187 = vdwg.mxu0
    %188 = vmatprep.subr.mxu0 %v103
    %189 = vmatpush1.msra.mxu0 %v102
    %190 = vmatprep.subr.mxu0 0.0
    %191 = vmatpush1.msra.mxu0 0.0
    %192 = vmatprep.subr.mxu0 0.0
    %193 = vmatpush1.msra.mxu0 0.0
    %194 = vmatprep.subr.mxu0 0.0
    %195 = vmatpush1.msra.mxu0 0.0
    %196 = vmatprep.subr.mxu0 0.0
    %197 = vmatpush1.msra.mxu0 0.0
    %198 = vmatprep.subr.mxu0 0.0
    %199 = vmatpush1.msra.mxu0 0.0
    %200 = vmatprep.subr.mxu0 0.0
    %201 = vmatpush1.msra.mxu0 0.0
    %202 = vmatprep.subr.mxu0 0.0
    %203 = vmatpush1.msra.mxu0 0.0
    %204 = vmatprep.subr.mxu0 0.0
    %205 = vmatpush1.msra.mxu0 0.0
    %206 = vmatprep.subr.mxu0 0.0
    %207 = vmatpush1.msra.mxu0 0.0
    %208 = vmatprep.subr.mxu0 0.0
    %209 = vmatpush1.msra.mxu0 0.0
    %210 = vmatprep.subr.mxu0 0.0
    %211 = vmatpush1.msra.mxu0 0.0
    %212 = vmatprep.subr.mxu0 0.0
    %213 = vmatpush1.msra.mxu0 0.0
    %214 = vmatprep.subr.mxu0 0.0
    %215 = vmatpush1.msra.mxu0 0.0
    %216 = vmatprep.subr.mxu0 0.0
    %217 = vmatpush1.msra.mxu0 0.0
    %218 = vmatprep.subr.mxu0 0.0
    %219 = vmatpush1.msra.mxu0 0.0
    %220 = vmatprep.subr.mxu0 0.0
    %221 = vmatpush1.msra.mxu0 0.0
    %222 = vmatprep.subr.mxu0 0.0
    %223 = vmatpush1.msra.mxu0 0.0
    %224 = vmatprep.subr.mxu0 0.0
    %225 = vmatpush1.msra.mxu0 0.0
    %226 = vmatprep.subr.mxu0 0.0
    %227 = vmatpush1.msra.mxu0 0.0
    %228 = vmatprep.subr.mxu0 0.0
    %229 = vmatpush1.msra.mxu0 0.0
    %230 = vmatprep.subr.mxu0 0.0
    %231 = vmatpush1.msra.mxu0 0.0
    %232 = vmatprep.subr.mxu0 0.0
    %233 = vmatpush1.msra.mxu0 0.0
    %234 = vmatprep.subr.mxu0 0.0
    %235 = vmatpush1.msra.mxu0 0.0
    %236 = vmatprep.subr.mxu0 0.0
    %237 = vmatpush1.msra.mxu0 0.0
    %238 = vmatprep.subr.mxu0 0.0
    %239 = vmatpush1.msra.mxu0 0.0
    %240 = vmatprep.subr.mxu0 0.0
    %241 = vmatpush1.msra.mxu0 0.0
    %242 = vmatprep.subr.mxu0 0.0
    %243 = vmatpush1.msra.mxu0 0.0
    %244 = vmatprep.subr.mxu0 0.0
    %245 = vmatpush1.msra.mxu0 0.0
    %246 = vmatprep.subr.mxu0 0.0
    %247 = vmatpush1.msra.mxu0 0.0
    %248 = vmatprep.subr.mxu0 0.0
    %249 = vmatpush1.msra.mxu0 0.0
    %250 = vmatprep.subr.mxu0 0.0
    %251 = vmatpush1.msra.mxu0 0.0
    %252 = vmatprep.mubr.f32.mxu0 0.0
    %253 = vmatmul.mubr.f32.gmra.mrb[0].mxu0 %v106
    %v254 = vpop.f32.mrb[0].mxu0
    %v255 = vadd.f32 0.0, %v254
    %v256 = vpop.f32.mrb[0].mxu0
    %v257 = vadd.f32 0.0, %v256
    %258 = vmatprep.mubr.f32.mxu0 0.0
    %259 = vmatmul.mubr.f32.gmra.mrb[0].mxu0 %v109
    %v260 = vpop.f32.mrb[0].mxu0
    %v261 = vadd.f32 0.0, %v260
    %v262 = vpop.f32.mrb[0].mxu0
    %v263 = vadd.f32 0.0, %v262
    %264 = vdwg.mxu0
    %v265 = vlaneseq
    %v266 = vand.u32 %v265, 127
    %v267 = vadd.s32 %v266, 128
    %v268 = vadd.s32 %v266, 256
    %v269 = vadd.s32 %v266, 384
    %v270 = vand.u32 %v266, 63
    %v271 = vand.u32 %v267, 63
    %v272 = vand.u32 %v268, 63
    %v273 = vand.u32 %v269, 63
    %v274 = vcvt.s32.f32 %v270
    %v275 = vcvt.s32.f32 %v271
    %v276 = vcvt.s32.f32 %v272
    %v277 = vcvt.s32.f32 %v273
    %vm278 = vcmp.eq.f32.partialorder %v178, %v274
    %vm279 = vcmp.eq.f32.partialorder %v180, %v275
    %vm280 = vcmp.eq.f32.partialorder %v255, %v276
    %vm281 = vcmp.eq.f32.partialorder %v257, %v277
    %vm282 = vcmp.eq.f32.partialorder %v184, %v274
    %vm283 = vcmp.eq.f32.partialorder %v186, %v275
    %vm284 = vcmp.eq.f32.partialorder %v261, %v276
    %vm285 = vcmp.eq.f32.partialorder %v263, %v277
    %v286 = vsel %vm278, 1, 0
    %v287 = vsel %vm279, 1, 0
    %v288 = vsel %vm280, 1, 0
    %v289 = vsel %vm281, 1, 0
    %v290 = vsel %vm282, 1, 0
    %v291 = vsel %vm283, 1, 0
    %v292 = vsel %vm284, 1, 0
    %v293 = vsel %vm285, 1, 0
    %v294 = vcvt.s32.f32 %v286
    %v295 = vcvt.s32.f32 %v287
    %v296 = vcvt.s32.f32 %v288
    %v297 = vcvt.s32.f32 %v289
    %v298 = vcvt.s32.f32 %v290
    %v299 = vcvt.s32.f32 %v291
    %v300 = vcvt.s32.f32 %v292
    %v301 = vcvt.s32.f32 %v293
    %v302 = vpack.c.bf16 %v298, %v294
    %v303 = vpack.c.bf16 %v299, %v295
    %v304 = vpack.c.bf16 %v300, %v296
    %v305 = vpack.c.bf16 %v301, %v297
    %v306 = vld [vmem:[#allocation6] sm:$0xff]
    %v307 = vld [vmem:[#allocation6 + $0x8] sm:$0xff]
    %v308 = vld [vmem:[#allocation6 + $0x10] sm:$0xff]
    %v309 = vld [vmem:[#allocation6 + $0x18] sm:$0xff]
    %v310 = vld [vmem:[#allocation6 + $0x20] sm:$0xff]
    %v311 = vld [vmem:[#allocation6 + $0x28] sm:$0xff]
    %v312 = vld [vmem:[#allocation6 + $0x30] sm:$0xff]
    %v313 = vld [vmem:[#allocation6 + $0x38] sm:$0xff]
    %v314 = vld [vmem:[#allocation6 + $0x40] sm:$0xff]
    %v315 = vld [vmem:[#allocation6 + $0x48] sm:$0xff]
    %v316 = vld [vmem:[#allocation6 + $0x50] sm:$0xff]
    %v317 = vld [vmem:[#allocation6 + $0x58] sm:$0xff]
    %v318 = vld [vmem:[#allocation6 + $0x60] sm:$0xff]
    %v319 = vld [vmem:[#allocation6 + $0x68] sm:$0xff]
    %v320 = vld [vmem:[#allocation6 + $0x70] sm:$0xff]
    %v321 = vld [vmem:[#allocation6 + $0x78] sm:$0xff]
    %v322 = vld [vmem:[#allocation6 + $0x80] sm:$0xff]
    %v323 = vld [vmem:[#allocation6 + $0x88] sm:$0xff]
    %v324 = vld [vmem:[#allocation6 + $0x90] sm:$0xff]
    %v325 = vld [vmem:[#allocation6 + $0x98] sm:$0xff]
    %v326 = vld [vmem:[#allocation6 + $0xa0] sm:$0xff]
    %v327 = vld [vmem:[#allocation6 + $0xa8] sm:$0xff]
    %v328 = vld [vmem:[#allocation6 + $0xb0] sm:$0xff]
    %v329 = vld [vmem:[#allocation6 + $0xb8] sm:$0xff]
    %v330 = vld [vmem:[#allocation6 + $0xc0] sm:$0xff]
    %v331 = vld [vmem:[#allocation6 + $0xc8] sm:$0xff]
    %v332 = vld [vmem:[#allocation6 + $0xd0] sm:$0xff]
    %v333 = vld [vmem:[#allocation6 + $0xd8] sm:$0xff]
    %v334 = vld [vmem:[#allocation6 + $0xe0] sm:$0xff]
    %v335 = vld [vmem:[#allocation6 + $0xe8] sm:$0xff]
    %v336 = vld [vmem:[#allocation6 + $0xf0] sm:$0xff]
    %v337 = vld [vmem:[#allocation6 + $0xf8] sm:$0xff]
    %v338 = vld [vmem:[#allocation6 + $0x100] sm:$0xff]
    %v339 = vld [vmem:[#allocation6 + $0x108] sm:$0xff]
    %v340 = vld [vmem:[#allocation6 + $0x110] sm:$0xff]
    %v341 = vld [vmem:[#allocation6 + $0x118] sm:$0xff]
    %v342 = vld [vmem:[#allocation6 + $0x120] sm:$0xff]
    %v343 = vld [vmem:[#allocation6 + $0x128] sm:$0xff]
    %v344 = vld [vmem:[#allocation6 + $0x130] sm:$0xff]
    %v345 = vld [vmem:[#allocation6 + $0x138] sm:$0xff]
    %v346 = vld [vmem:[#allocation6 + $0x140] sm:$0xff]
    %v347 = vld [vmem:[#allocation6 + $0x148] sm:$0xff]
    %v348 = vld [vmem:[#allocation6 + $0x150] sm:$0xff]
    %v349 = vld [vmem:[#allocation6 + $0x158] sm:$0xff]
    %v350 = vld [vmem:[#allocation6 + $0x160] sm:$0xff]
    %v351 = vld [vmem:[#allocation6 + $0x168] sm:$0xff]
    %v352 = vld [vmem:[#allocation6 + $0x170] sm:$0xff]
    %v353 = vld [vmem:[#allocation6 + $0x178] sm:$0xff]
    %v354 = vld [vmem:[#allocation6 + $0x180] sm:$0xff]
    %v355 = vld [vmem:[#allocation6 + $0x188] sm:$0xff]
    %v356 = vld [vmem:[#allocation6 + $0x190] sm:$0xff]
    %v357 = vld [vmem:[#allocation6 + $0x198] sm:$0xff]
    %v358 = vld [vmem:[#allocation6 + $0x1a0] sm:$0xff]
    %v359 = vld [vmem:[#allocation6 + $0x1a8] sm:$0xff]
    %v360 = vld [vmem:[#allocation6 + $0x1b0] sm:$0xff]
    %v361 = vld [vmem:[#allocation6 + $0x1b8] sm:$0xff]
    %v362 = vld [vmem:[#allocation6 + $0x1c0] sm:$0xff]
    %v363 = vld [vmem:[#allocation6 + $0x1c8] sm:$0xff]
    %v364 = vld [vmem:[#allocation6 + $0x1d0] sm:$0xff]
    %v365 = vld [vmem:[#allocation6 + $0x1d8] sm:$0xff]
    %v366 = vld [vmem:[#allocation6 + $0x1e0] sm:$0xff]
    %v367 = vld [vmem:[#allocation6 + $0x1e8] sm:$0xff]
    %v368 = vld [vmem:[#allocation6 + $0x1f0] sm:$0xff]
    %v369 = vld [vmem:[#allocation6 + $0x1f8] sm:$0xff]
    %v370 = vld [vmem:[#allocation6 + $0x200] sm:$0xff]
    %v371 = vld [vmem:[#allocation6 + $0x208] sm:$0xff]
    %v372 = vld [vmem:[#allocation6 + $0x210] sm:$0xff]
    %v373 = vld [vmem:[#allocation6 + $0x218] sm:$0xff]
    %v374 = vld [vmem:[#allocation6 + $0x220] sm:$0xff]
    %v375 = vld [vmem:[#allocation6 + $0x228] sm:$0xff]
    %v376 = vld [vmem:[#allocation6 + $0x230] sm:$0xff]
    %v377 = vld [vmem:[#allocation6 + $0x238] sm:$0xff]
    %v378 = vld [vmem:[#allocation6 + $0x240] sm:$0xff]
    %v379 = vld [vmem:[#allocation6 + $0x248] sm:$0xff]
    %v380 = vld [vmem:[#allocation6 + $0x250] sm:$0xff]
    %v381 = vld [vmem:[#allocation6 + $0x258] sm:$0xff]
    %v382 = vld [vmem:[#allocation6 + $0x260] sm:$0xff]
    %v383 = vld [vmem:[#allocation6 + $0x268] sm:$0xff]
    %v384 = vld [vmem:[#allocation6 + $0x270] sm:$0xff]
    %v385 = vld [vmem:[#allocation6 + $0x278] sm:$0xff]
    %v386 = vld [vmem:[#allocation6 + $0x280] sm:$0xff]
    %v387 = vld [vmem:[#allocation6 + $0x288] sm:$0xff]
    %v388 = vld [vmem:[#allocation6 + $0x290] sm:$0xff]
    %v389 = vld [vmem:[#allocation6 + $0x298] sm:$0xff]
    %v390 = vld [vmem:[#allocation6 + $0x2a0] sm:$0xff]
    %v391 = vld [vmem:[#allocation6 + $0x2a8] sm:$0xff]
    %v392 = vld [vmem:[#allocation6 + $0x2b0] sm:$0xff]
    %v393 = vld [vmem:[#allocation6 + $0x2b8] sm:$0xff]
    %v394 = vld [vmem:[#allocation6 + $0x2c0] sm:$0xff]
    %v395 = vld [vmem:[#allocation6 + $0x2c8] sm:$0xff]
    %v396 = vld [vmem:[#allocation6 + $0x2d0] sm:$0xff]
    %v397 = vld [vmem:[#allocation6 + $0x2d8] sm:$0xff]
    %v398 = vld [vmem:[#allocation6 + $0x2e0] sm:$0xff]
    %v399 = vld [vmem:[#allocation6 + $0x2e8] sm:$0xff]
    %v400 = vld [vmem:[#allocation6 + $0x2f0] sm:$0xff]
    %v401 = vld [vmem:[#allocation6 + $0x2f8] sm:$0xff]
    %v402 = vld [vmem:[#allocation6 + $0x300] sm:$0xff]
    %v403 = vld [vmem:[#allocation6 + $0x308] sm:$0xff]
    %v404 = vld [vmem:[#allocation6 + $0x310] sm:$0xff]
    %v405 = vld [vmem:[#allocation6 + $0x318] sm:$0xff]
    %v406 = vld [vmem:[#allocation6 + $0x320] sm:$0xff]
    %v407 = vld [vmem:[#allocation6 + $0x328] sm:$0xff]
    %v408 = vld [vmem:[#allocation6 + $0x330] sm:$0xff]
    %v409 = vld [vmem:[#allocation6 + $0x338] sm:$0xff]
    %v410 = vld [vmem:[#allocation6 + $0x340] sm:$0xff]
    %v411 = vld [vmem:[#allocation6 + $0x348] sm:$0xff]
    %v412 = vld [vmem:[#allocation6 + $0x350] sm:$0xff]
    %v413 = vld [vmem:[#allocation6 + $0x358] sm:$0xff]
    %v414 = vld [vmem:[#allocation6 + $0x360] sm:$0xff]
    %v415 = vld [vmem:[#allocation6 + $0x368] sm:$0xff]
    %v416 = vld [vmem:[#allocation6 + $0x370] sm:$0xff]
    %v417 = vld [vmem:[#allocation6 + $0x378] sm:$0xff]
    %v418 = vld [vmem:[#allocation6 + $0x380] sm:$0xff]
    %v419 = vld [vmem:[#allocation6 + $0x388] sm:$0xff]
    %v420 = vld [vmem:[#allocation6 + $0x390] sm:$0xff]
    %v421 = vld [vmem:[#allocation6 + $0x398] sm:$0xff]
    %v422 = vld [vmem:[#allocation6 + $0x3a0] sm:$0xff]
    %v423 = vld [vmem:[#allocation6 + $0x3a8] sm:$0xff]
    %v424 = vld [vmem:[#allocation6 + $0x3b0] sm:$0xff]
    %v425 = vld [vmem:[#allocation6 + $0x3b8] sm:$0xff]
    %v426 = vld [vmem:[#allocation6 + $0x3c0] sm:$0xff]
    %v427 = vld [vmem:[#allocation6 + $0x3c8] sm:$0xff]
    %v428 = vld [vmem:[#allocation6 + $0x3d0] sm:$0xff]
    %v429 = vld [vmem:[#allocation6 + $0x3d8] sm:$0xff]
    %v430 = vld [vmem:[#allocation6 + $0x3e0] sm:$0xff]
    %v431 = vld [vmem:[#allocation6 + $0x3e8] sm:$0xff]
    %v432 = vld [vmem:[#allocation6 + $0x3f0] sm:$0xff]
    %v433 = vld [vmem:[#allocation6 + $0x3f8] sm:$0xff]
    %v434 = vld [vmem:[#allocation6 + $0x400] sm:$0xff]
    %v435 = vld [vmem:[#allocation6 + $0x408] sm:$0xff]
    %v436 = vld [vmem:[#allocation6 + $0x410] sm:$0xff]
    %v437 = vld [vmem:[#allocation6 + $0x418] sm:$0xff]
    %v438 = vld [vmem:[#allocation6 + $0x420] sm:$0xff]
    %v439 = vld [vmem:[#allocation6 + $0x428] sm:$0xff]
    %v440 = vld [vmem:[#allocation6 + $0x430] sm:$0xff]
    %v441 = vld [vmem:[#allocation6 + $0x438] sm:$0xff]
    %v442 = vld [vmem:[#allocation6 + $0x440] sm:$0xff]
    %v443 = vld [vmem:[#allocation6 + $0x448] sm:$0xff]
    %v444 = vld [vmem:[#allocation6 + $0x450] sm:$0xff]
    %v445 = vld [vmem:[#allocation6 + $0x458] sm:$0xff]
    %v446 = vld [vmem:[#allocation6 + $0x460] sm:$0xff]
    %v447 = vld [vmem:[#allocation6 + $0x468] sm:$0xff]
    %v448 = vld [vmem:[#allocation6 + $0x470] sm:$0xff]
    %v449 = vld [vmem:[#allocation6 + $0x478] sm:$0xff]
    %v450 = vld [vmem:[#allocation6 + $0x480] sm:$0xff]
    %v451 = vld [vmem:[#allocation6 + $0x488] sm:$0xff]
    %v452 = vld [vmem:[#allocation6 + $0x490] sm:$0xff]
    %v453 = vld [vmem:[#allocation6 + $0x498] sm:$0xff]
    %v454 = vld [vmem:[#allocation6 + $0x4a0] sm:$0xff]
    %v455 = vld [vmem:[#allocation6 + $0x4a8] sm:$0xff]
    %v456 = vld [vmem:[#allocation6 + $0x4b0] sm:$0xff]
    %v457 = vld [vmem:[#allocation6 + $0x4b8] sm:$0xff]
    %v458 = vld [vmem:[#allocation6 + $0x4c0] sm:$0xff]
    %v459 = vld [vmem:[#allocation6 + $0x4c8] sm:$0xff]
    %v460 = vld [vmem:[#allocation6 + $0x4d0] sm:$0xff]
    %v461 = vld [vmem:[#allocation6 + $0x4d8] sm:$0xff]
    %v462 = vld [vmem:[#allocation6 + $0x4e0] sm:$0xff]
    %v463 = vld [vmem:[#allocation6 + $0x4e8] sm:$0xff]
    %v464 = vld [vmem:[#allocation6 + $0x4f0] sm:$0xff]
    %v465 = vld [vmem:[#allocation6 + $0x4f8] sm:$0xff]
    %v466 = vld [vmem:[#allocation6 + $0x500] sm:$0xff]
    %v467 = vld [vmem:[#allocation6 + $0x508] sm:$0xff]
    %v468 = vld [vmem:[#allocation6 + $0x510] sm:$0xff]
    %v469 = vld [vmem:[#allocation6 + $0x518] sm:$0xff]
    %v470 = vld [vmem:[#allocation6 + $0x520] sm:$0xff]
    %v471 = vld [vmem:[#allocation6 + $0x528] sm:$0xff]
    %v472 = vld [vmem:[#allocation6 + $0x530] sm:$0xff]
    %v473 = vld [vmem:[#allocation6 + $0x538] sm:$0xff]
    %v474 = vld [vmem:[#allocation6 + $0x540] sm:$0xff]
    %v475 = vld [vmem:[#allocation6 + $0x548] sm:$0xff]
    %v476 = vld [vmem:[#allocation6 + $0x550] sm:$0xff]
    %v477 = vld [vmem:[#allocation6 + $0x558] sm:$0xff]
    %v478 = vld [vmem:[#allocation6 + $0x560] sm:$0xff]
    %v479 = vld [vmem:[#allocation6 + $0x568] sm:$0xff]
    %v480 = vld [vmem:[#allocation6 + $0x570] sm:$0xff]
    %v481 = vld [vmem:[#allocation6 + $0x578] sm:$0xff]
    %v482 = vld [vmem:[#allocation6 + $0x580] sm:$0xff]
    %v483 = vld [vmem:[#allocation6 + $0x588] sm:$0xff]
    %v484 = vld [vmem:[#allocation6 + $0x590] sm:$0xff]
    %v485 = vld [vmem:[#allocation6 + $0x598] sm:$0xff]
    %v486 = vld [vmem:[#allocation6 + $0x5a0] sm:$0xff]
    %v487 = vld [vmem:[#allocation6 + $0x5a8] sm:$0xff]
    %v488 = vld [vmem:[#allocation6 + $0x5b0] sm:$0xff]
    %v489 = vld [vmem:[#allocation6 + $0x5b8] sm:$0xff]
    %v490 = vld [vmem:[#allocation6 + $0x5c0] sm:$0xff]
    %v491 = vld [vmem:[#allocation6 + $0x5c8] sm:$0xff]
    %v492 = vld [vmem:[#allocation6 + $0x5d0] sm:$0xff]
    %v493 = vld [vmem:[#allocation6 + $0x5d8] sm:$0xff]
    %v494 = vld [vmem:[#allocation6 + $0x5e0] sm:$0xff]
    %v495 = vld [vmem:[#allocation6 + $0x5e8] sm:$0xff]
    %v496 = vld [vmem:[#allocation6 + $0x5f0] sm:$0xff]
    %v497 = vld [vmem:[#allocation6 + $0x5f8] sm:$0xff]
    %v498 = vld [vmem:[%s3] sm:$0x3f]
    %v500 = vlaneseq
    %v501 = vshrl.u32 %v500, 7
    %v502 = vsub.s32 0, %v501
    %v503 = vrot.slane %v498, %v502
    %v504 = vlaneseq
    %v505 = vshrl.u32 %v504, 7
    %v506 = vsub.s32 1, %v505
    %v507 = vrot.slane %v498, %v506
    %v508 = vlaneseq
    %v509 = vshrl.u32 %v508, 7
    %v510 = vsub.s32 2, %v509
    %v511 = vrot.slane %v498, %v510
    %v512 = vlaneseq
    %v513 = vshrl.u32 %v512, 7
    %v514 = vsub.s32 3, %v513
    %v515 = vrot.slane %v498, %v514
    %v516 = vlaneseq
    %v517 = vshrl.u32 %v516, 7
    %v518 = vsub.s32 4, %v517
    %v519 = vrot.slane %v498, %v518
    %v520 = vlaneseq
    %v521 = vshrl.u32 %v520, 7
    %v522 = vsub.s32 5, %v521
    %v523 = vrot.slane %v498, %v522
    %v722 = vunpack.c.l.b16 %v306
    %v723 = vunpack.c.h.b16 %v306
    %v724 = vunpack.c.l.b16 %v307
    %v725 = vunpack.c.h.b16 %v307
    %v726 = vunpack.c.l.b16 %v308
    %v727 = vunpack.c.h.b16 %v308
    %v728 = vunpack.c.l.b16 %v309
    %v729 = vunpack.c.h.b16 %v309
    %v730 = vunpack.c.l.b16 %v310
    %v731 = vunpack.c.h.b16 %v310
    %v732 = vunpack.c.l.b16 %v311
    %v733 = vunpack.c.h.b16 %v311
    %v734 = vunpack.c.l.b16 %v312
    %v735 = vunpack.c.h.b16 %v312
    %v736 = vunpack.c.l.b16 %v313
    %v737 = vunpack.c.h.b16 %v313
    %v738 = vunpack.c.l.b16 %v314
    %v739 = vunpack.c.h.b16 %v314
    %v740 = vunpack.c.l.b16 %v315
    %v741 = vunpack.c.h.b16 %v315
    %v742 = vunpack.c.l.b16 %v316
    %v743 = vunpack.c.h.b16 %v316
    %v744 = vunpack.c.l.b16 %v317
    %v745 = vunpack.c.h.b16 %v317
    %v746 = vunpack.c.l.b16 %v318
    %v747 = vunpack.c.h.b16 %v318
    %v748 = vunpack.c.l.b16 %v319
    %v749 = vunpack.c.h.b16 %v319
    %v750 = vunpack.c.l.b16 %v320
    %v751 = vunpack.c.h.b16 %v320
    %v752 = vunpack.c.l.b16 %v321
    %v753 = vunpack.c.h.b16 %v321
    %v754 = vunpack.c.l.b16 %v322
    %v755 = vunpack.c.h.b16 %v322
    %v756 = vunpack.c.l.b16 %v323
    %v757 = vunpack.c.h.b16 %v323
    %v758 = vunpack.c.l.b16 %v324
    %v759 = vunpack.c.h.b16 %v324
    %v760 = vunpack.c.l.b16 %v325
    %v761 = vunpack.c.h.b16 %v325
    %v762 = vunpack.c.l.b16 %v326
    %v763 = vunpack.c.h.b16 %v326
    %v764 = vunpack.c.l.b16 %v327
    %v765 = vunpack.c.h.b16 %v327
    %v766 = vunpack.c.l.b16 %v328
    %v767 = vunpack.c.h.b16 %v328
    %v768 = vunpack.c.l.b16 %v329
    %v769 = vunpack.c.h.b16 %v329
    %v770 = vunpack.c.l.b16 %v330
    %v771 = vunpack.c.h.b16 %v330
    %v772 = vunpack.c.l.b16 %v331
    %v773 = vunpack.c.h.b16 %v331
    %v774 = vunpack.c.l.b16 %v332
    %v775 = vunpack.c.h.b16 %v332
    %v776 = vunpack.c.l.b16 %v333
    %v777 = vunpack.c.h.b16 %v333
    %v778 = vunpack.c.l.b16 %v334
    %v779 = vunpack.c.h.b16 %v334
    %v780 = vunpack.c.l.b16 %v335
    %v781 = vunpack.c.h.b16 %v335
    %v782 = vunpack.c.l.b16 %v336
    %v783 = vunpack.c.h.b16 %v336
    %v784 = vunpack.c.l.b16 %v337
    %v785 = vunpack.c.h.b16 %v337
    %v786 = vunpack.c.l.b16 %v338
    %v787 = vunpack.c.h.b16 %v338
    %v788 = vunpack.c.l.b16 %v339
    %v789 = vunpack.c.h.b16 %v339
    %v790 = vunpack.c.l.b16 %v340
    %v791 = vunpack.c.h.b16 %v340
    %v792 = vunpack.c.l.b16 %v341
    %v793 = vunpack.c.h.b16 %v341
    %v794 = vunpack.c.l.b16 %v342
    %v795 = vunpack.c.h.b16 %v342
    %v796 = vunpack.c.l.b16 %v343
    %v797 = vunpack.c.h.b16 %v343
    %v798 = vunpack.c.l.b16 %v344
    %v799 = vunpack.c.h.b16 %v344
    %v800 = vunpack.c.l.b16 %v345
    %v801 = vunpack.c.h.b16 %v345
    %v802 = vunpack.c.l.b16 %v346
    %v803 = vunpack.c.h.b16 %v346
    %v804 = vunpack.c.l.b16 %v347
    %v805 = vunpack.c.h.b16 %v347
    %v806 = vunpack.c.l.b16 %v348
    %v807 = vunpack.c.h.b16 %v348
    %v808 = vunpack.c.l.b16 %v349
    %v809 = vunpack.c.h.b16 %v349
    %v810 = vunpack.c.l.b16 %v350
    %v811 = vunpack.c.h.b16 %v350
    %v812 = vunpack.c.l.b16 %v351
    %v813 = vunpack.c.h.b16 %v351
    %v814 = vunpack.c.l.b16 %v352
    %v815 = vunpack.c.h.b16 %v352
    %v816 = vunpack.c.l.b16 %v353
    %v817 = vunpack.c.h.b16 %v353
    %v818 = vunpack.c.l.b16 %v354
    %v819 = vunpack.c.h.b16 %v354
    %v820 = vunpack.c.l.b16 %v355
    %v821 = vunpack.c.h.b16 %v355
    %v822 = vunpack.c.l.b16 %v356
    %v823 = vunpack.c.h.b16 %v356
    %v824 = vunpack.c.l.b16 %v357
    %v825 = vunpack.c.h.b16 %v357
    %v826 = vunpack.c.l.b16 %v358
    %v827 = vunpack.c.h.b16 %v358
    %v828 = vunpack.c.l.b16 %v359
    %v829 = vunpack.c.h.b16 %v359
    %v830 = vunpack.c.l.b16 %v360
    %v831 = vunpack.c.h.b16 %v360
    %v832 = vunpack.c.l.b16 %v361
    %v833 = vunpack.c.h.b16 %v361
    %v834 = vunpack.c.l.b16 %v362
    %v835 = vunpack.c.h.b16 %v362
    %v836 = vunpack.c.l.b16 %v363
    %v837 = vunpack.c.h.b16 %v363
    %v838 = vunpack.c.l.b16 %v364
    %v839 = vunpack.c.h.b16 %v364
    %v840 = vunpack.c.l.b16 %v365
    %v841 = vunpack.c.h.b16 %v365
    %v842 = vunpack.c.l.b16 %v366
    %v843 = vunpack.c.h.b16 %v366
    %v844 = vunpack.c.l.b16 %v367
    %v845 = vunpack.c.h.b16 %v367
    %v846 = vunpack.c.l.b16 %v368
    %v847 = vunpack.c.h.b16 %v368
    %v848 = vunpack.c.l.b16 %v369
    %v849 = vunpack.c.h.b16 %v369
    %v850 = vunpack.c.l.b16 %v370
    %v851 = vunpack.c.h.b16 %v370
    %v852 = vunpack.c.l.b16 %v371
    %v853 = vunpack.c.h.b16 %v371
    %v854 = vunpack.c.l.b16 %v372
    %v855 = vunpack.c.h.b16 %v372
    %v856 = vunpack.c.l.b16 %v373
    %v857 = vunpack.c.h.b16 %v373
    %v858 = vunpack.c.l.b16 %v374
    %v859 = vunpack.c.h.b16 %v374
    %v860 = vunpack.c.l.b16 %v375
    %v861 = vunpack.c.h.b16 %v375
    %v862 = vunpack.c.l.b16 %v376
    %v863 = vunpack.c.h.b16 %v376
    %v864 = vunpack.c.l.b16 %v377
    %v865 = vunpack.c.h.b16 %v377
    %v866 = vunpack.c.l.b16 %v378
    %v867 = vunpack.c.h.b16 %v378
    %v868 = vunpack.c.l.b16 %v379
    %v869 = vunpack.c.h.b16 %v379
    %v870 = vunpack.c.l.b16 %v380
    %v871 = vunpack.c.h.b16 %v380
    %v872 = vunpack.c.l.b16 %v381
    %v873 = vunpack.c.h.b16 %v381
    %v874 = vunpack.c.l.b16 %v382
    %v875 = vunpack.c.h.b16 %v382
    %v876 = vunpack.c.l.b16 %v383
    %v877 = vunpack.c.h.b16 %v383
    %v878 = vunpack.c.l.b16 %v384
    %v879 = vunpack.c.h.b16 %v384
    %v880 = vunpack.c.l.b16 %v385
    %v881 = vunpack.c.h.b16 %v385
    %v882 = vunpack.c.l.b16 %v386
    %v883 = vunpack.c.h.b16 %v386
    %v884 = vunpack.c.l.b16 %v387
    %v885 = vunpack.c.h.b16 %v387
    %v886 = vunpack.c.l.b16 %v388
    %v887 = vunpack.c.h.b16 %v388
    %v888 = vunpack.c.l.b16 %v389
    %v889 = vunpack.c.h.b16 %v389
    %v890 = vunpack.c.l.b16 %v390
    %v891 = vunpack.c.h.b16 %v390
    %v892 = vunpack.c.l.b16 %v391
    %v893 = vunpack.c.h.b16 %v391
    %v894 = vunpack.c.l.b16 %v392
    %v895 = vunpack.c.h.b16 %v392
    %v896 = vunpack.c.l.b16 %v393
    %v897 = vunpack.c.h.b16 %v393
    %v898 = vunpack.c.l.b16 %v394
    %v899 = vunpack.c.h.b16 %v394
    %v900 = vunpack.c.l.b16 %v395
    %v901 = vunpack.c.h.b16 %v395
    %v902 = vunpack.c.l.b16 %v396
    %v903 = vunpack.c.h.b16 %v396
    %v904 = vunpack.c.l.b16 %v397
    %v905 = vunpack.c.h.b16 %v397
    %v906 = vunpack.c.l.b16 %v398
    %v907 = vunpack.c.h.b16 %v398
    %v908 = vunpack.c.l.b16 %v399
    %v909 = vunpack.c.h.b16 %v399
    %v910 = vunpack.c.l.b16 %v400
    %v911 = vunpack.c.h.b16 %v400
    %v912 = vunpack.c.l.b16 %v401
    %v913 = vunpack.c.h.b16 %v401
    %v914 = vunpack.c.l.b16 %v402
    %v915 = vunpack.c.h.b16 %v402
    %v916 = vunpack.c.l.b16 %v403
    %v917 = vunpack.c.h.b16 %v403
    %v918 = vunpack.c.l.b16 %v404
    %v919 = vunpack.c.h.b16 %v404
    %v920 = vunpack.c.l.b16 %v405
    %v921 = vunpack.c.h.b16 %v405
    %v922 = vunpack.c.l.b16 %v406
    %v923 = vunpack.c.h.b16 %v406
    %v924 = vunpack.c.l.b16 %v407
    %v925 = vunpack.c.h.b16 %v407
    %v926 = vunpack.c.l.b16 %v408
    %v927 = vunpack.c.h.b16 %v408
    %v928 = vunpack.c.l.b16 %v409
    %v929 = vunpack.c.h.b16 %v409
    %v930 = vunpack.c.l.b16 %v410
    %v931 = vunpack.c.h.b16 %v410
    %v932 = vunpack.c.l.b16 %v411
    %v933 = vunpack.c.h.b16 %v411
    %v934 = vunpack.c.l.b16 %v412
    %v935 = vunpack.c.h.b16 %v412
    %v936 = vunpack.c.l.b16 %v413
    %v937 = vunpack.c.h.b16 %v413
    %v938 = vunpack.c.l.b16 %v414
    %v939 = vunpack.c.h.b16 %v414
    %v940 = vunpack.c.l.b16 %v415
    %v941 = vunpack.c.h.b16 %v415
    %v942 = vunpack.c.l.b16 %v416
    %v943 = vunpack.c.h.b16 %v416
    %v944 = vunpack.c.l.b16 %v417
    %v945 = vunpack.c.h.b16 %v417
    %v946 = vunpack.c.l.b16 %v418
    %v947 = vunpack.c.h.b16 %v418
    %v948 = vunpack.c.l.b16 %v419
    %v949 = vunpack.c.h.b16 %v419
    %v950 = vunpack.c.l.b16 %v420
    %v951 = vunpack.c.h.b16 %v420
    %v952 = vunpack.c.l.b16 %v421
    %v953 = vunpack.c.h.b16 %v421
    %v954 = vunpack.c.l.b16 %v422
    %v955 = vunpack.c.h.b16 %v422
    %v956 = vunpack.c.l.b16 %v423
    %v957 = vunpack.c.h.b16 %v423
    %v958 = vunpack.c.l.b16 %v424
    %v959 = vunpack.c.h.b16 %v424
    %v960 = vunpack.c.l.b16 %v425
    %v961 = vunpack.c.h.b16 %v425
    %v962 = vunpack.c.l.b16 %v426
    %v963 = vunpack.c.h.b16 %v426
    %v964 = vunpack.c.l.b16 %v427
    %v965 = vunpack.c.h.b16 %v427
    %v966 = vunpack.c.l.b16 %v428
    %v967 = vunpack.c.h.b16 %v428
    %v968 = vunpack.c.l.b16 %v429
    %v969 = vunpack.c.h.b16 %v429
    %v970 = vunpack.c.l.b16 %v430
    %v971 = vunpack.c.h.b16 %v430
    %v972 = vunpack.c.l.b16 %v431
    %v973 = vunpack.c.h.b16 %v431
    %v974 = vunpack.c.l.b16 %v432
    %v975 = vunpack.c.h.b16 %v432
    %v976 = vunpack.c.l.b16 %v433
    %v977 = vunpack.c.h.b16 %v433
    %v978 = vunpack.c.l.b16 %v434
    %v979 = vunpack.c.h.b16 %v434
    %v980 = vunpack.c.l.b16 %v435
    %v981 = vunpack.c.h.b16 %v435
    %v982 = vunpack.c.l.b16 %v436
    %v983 = vunpack.c.h.b16 %v436
    %v984 = vunpack.c.l.b16 %v437
    %v985 = vunpack.c.h.b16 %v437
    %v986 = vunpack.c.l.b16 %v438
    %v987 = vunpack.c.h.b16 %v438
    %v988 = vunpack.c.l.b16 %v439
    %v989 = vunpack.c.h.b16 %v439
    %v990 = vunpack.c.l.b16 %v440
    %v991 = vunpack.c.h.b16 %v440
    %v992 = vunpack.c.l.b16 %v441
    %v993 = vunpack.c.h.b16 %v441
    %v994 = vunpack.c.l.b16 %v442
    %v995 = vunpack.c.h.b16 %v442
    %v996 = vunpack.c.l.b16 %v443
    %v997 = vunpack.c.h.b16 %v443
    %v998 = vunpack.c.l.b16 %v444
    %v999 = vunpack.c.h.b16 %v444
    %v1000 = vunpack.c.l.b16 %v445
    %v1001 = vunpack.c.h.b16 %v445
    %v1002 = vunpack.c.l.b16 %v446
    %v1003 = vunpack.c.h.b16 %v446
    %v1004 = vunpack.c.l.b16 %v447
    %v1005 = vunpack.c.h.b16 %v447
    %v1006 = vunpack.c.l.b16 %v448
    %v1007 = vunpack.c.h.b16 %v448
    %v1008 = vunpack.c.l.b16 %v449
    %v1009 = vunpack.c.h.b16 %v449
    %v1010 = vunpack.c.l.b16 %v450
    %v1011 = vunpack.c.h.b16 %v450
    %v1012 = vunpack.c.l.b16 %v451
    %v1013 = vunpack.c.h.b16 %v451
    %v1014 = vunpack.c.l.b16 %v452
    %v1015 = vunpack.c.h.b16 %v452
    %v1016 = vunpack.c.l.b16 %v453
    %v1017 = vunpack.c.h.b16 %v453
    %v1018 = vunpack.c.l.b16 %v454
    %v1019 = vunpack.c.h.b16 %v454
    %v1020 = vunpack.c.l.b16 %v455
    %v1021 = vunpack.c.h.b16 %v455
    %v1022 = vunpack.c.l.b16 %v456
    %v1023 = vunpack.c.h.b16 %v456
    %v1024 = vunpack.c.l.b16 %v457
    %v1025 = vunpack.c.h.b16 %v457
    %v1026 = vunpack.c.l.b16 %v458
    %v1027 = vunpack.c.h.b16 %v458
    %v1028 = vunpack.c.l.b16 %v459
    %v1029 = vunpack.c.h.b16 %v459
    %v1030 = vunpack.c.l.b16 %v460
    %v1031 = vunpack.c.h.b16 %v460
    %v1032 = vunpack.c.l.b16 %v461
    %v1033 = vunpack.c.h.b16 %v461
    %v1034 = vunpack.c.l.b16 %v462
    %v1035 = vunpack.c.h.b16 %v462
    %v1036 = vunpack.c.l.b16 %v463
    %v1037 = vunpack.c.h.b16 %v463
    %v1038 = vunpack.c.l.b16 %v464
    %v1039 = vunpack.c.h.b16 %v464
    %v1040 = vunpack.c.l.b16 %v465
    %v1041 = vunpack.c.h.b16 %v465
    %v1042 = vunpack.c.l.b16 %v466
    %v1043 = vunpack.c.h.b16 %v466
    %v1044 = vunpack.c.l.b16 %v467
    %v1045 = vunpack.c.h.b16 %v467
    %v1046 = vunpack.c.l.b16 %v468
    %v1047 = vunpack.c.h.b16 %v468
    %v1048 = vunpack.c.l.b16 %v469
    %v1049 = vunpack.c.h.b16 %v469
    %v1050 = vunpack.c.l.b16 %v470
    %v1051 = vunpack.c.h.b16 %v470
    %v1052 = vunpack.c.l.b16 %v471
    %v1053 = vunpack.c.h.b16 %v471
    %v1054 = vunpack.c.l.b16 %v472
    %v1055 = vunpack.c.h.b16 %v472
    %v1056 = vunpack.c.l.b16 %v473
    %v1057 = vunpack.c.h.b16 %v473
    %v1058 = vunpack.c.l.b16 %v474
    %v1059 = vunpack.c.h.b16 %v474
    %v1060 = vunpack.c.l.b16 %v475
    %v1061 = vunpack.c.h.b16 %v475
    %v1062 = vunpack.c.l.b16 %v476
    %v1063 = vunpack.c.h.b16 %v476
    %v1064 = vunpack.c.l.b16 %v477
    %v1065 = vunpack.c.h.b16 %v477
    %v1066 = vunpack.c.l.b16 %v478
    %v1067 = vunpack.c.h.b16 %v478
    %v1068 = vunpack.c.l.b16 %v479
    %v1069 = vunpack.c.h.b16 %v479
    %v1070 = vunpack.c.l.b16 %v480
    %v1071 = vunpack.c.h.b16 %v480
    %v1072 = vunpack.c.l.b16 %v481
    %v1073 = vunpack.c.h.b16 %v481
    %v1074 = vunpack.c.l.b16 %v482
    %v1075 = vunpack.c.h.b16 %v482
    %v1076 = vunpack.c.l.b16 %v483
    %v1077 = vunpack.c.h.b16 %v483
    %v1078 = vunpack.c.l.b16 %v484
    %v1079 = vunpack.c.h.b16 %v484
    %v1080 = vunpack.c.l.b16 %v485
    %v1081 = vunpack.c.h.b16 %v485
    %v1082 = vunpack.c.l.b16 %v486
    %v1083 = vunpack.c.h.b16 %v486
    %v1084 = vunpack.c.l.b16 %v487
    %v1085 = vunpack.c.h.b16 %v487
    %v1086 = vunpack.c.l.b16 %v488
    %v1087 = vunpack.c.h.b16 %v488
    %v1088 = vunpack.c.l.b16 %v489
    %v1089 = vunpack.c.h.b16 %v489
    %v1090 = vunpack.c.l.b16 %v490
    %v1091 = vunpack.c.h.b16 %v490
    %v1092 = vunpack.c.l.b16 %v491
    %v1093 = vunpack.c.h.b16 %v491
    %v1094 = vunpack.c.l.b16 %v492
    %v1095 = vunpack.c.h.b16 %v492
    %v1096 = vunpack.c.l.b16 %v493
    %v1097 = vunpack.c.h.b16 %v493
    %v1098 = vunpack.c.l.b16 %v494
    %v1099 = vunpack.c.h.b16 %v494
    %v1100 = vunpack.c.l.b16 %v495
    %v1101 = vunpack.c.h.b16 %v495
    %v1102 = vunpack.c.l.b16 %v496
    %v1103 = vunpack.c.h.b16 %v496
    %v1104 = vunpack.c.l.b16 %v497
    %v1105 = vunpack.c.h.b16 %v497
    %v1106 = vpack.c.b16 %v728, %v722
    %v1107 = vpack.c.b16 %v729, %v723
    %v1108 = vpack.c.b16 %v730, %v724
    %v1109 = vpack.c.b16 %v731, %v725
    %v1110 = vpack.c.b16 %v732, %v726
    %v1111 = vpack.c.b16 %v733, %v727
    %v1112 = vpack.c.b16 %v740, %v734
    %v1113 = vpack.c.b16 %v741, %v735
    %v1114 = vpack.c.b16 %v742, %v736
    %v1115 = vpack.c.b16 %v743, %v737
    %v1116 = vpack.c.b16 %v744, %v738
    %v1117 = vpack.c.b16 %v745, %v739
    %v1118 = vpack.c.b16 %v752, %v746
    %v1119 = vpack.c.b16 %v753, %v747
    %v1120 = vpack.c.b16 %v754, %v748
    %v1121 = vpack.c.b16 %v755, %v749
    %v1122 = vpack.c.b16 %v756, %v750
    %v1123 = vpack.c.b16 %v757, %v751
    %v1124 = vpack.c.b16 %v764, %v758
    %v1125 = vpack.c.b16 %v765, %v759
    %v1126 = vpack.c.b16 %v766, %v760
    %v1127 = vpack.c.b16 %v767, %v761
    %v1128 = vpack.c.b16 %v768, %v762
    %v1129 = vpack.c.b16 %v769, %v763
    %v1130 = vpack.c.b16 %v776, %v770
    %v1131 = vpack.c.b16 %v777, %v771
    %v1132 = vpack.c.b16 %v778, %v772
    %v1133 = vpack.c.b16 %v779, %v773
    %v1134 = vpack.c.b16 %v780, %v774
    %v1135 = vpack.c.b16 %v781, %v775
    %v1136 = vpack.c.b16 %v788, %v782
    %v1137 = vpack.c.b16 %v789, %v783
    %v1138 = vpack.c.b16 %v790, %v784
    %v1139 = vpack.c.b16 %v791, %v785
    %v1140 = vpack.c.b16 %v792, %v786
    %v1141 = vpack.c.b16 %v793, %v787
    %v1142 = vpack.c.b16 %v800, %v794
    %v1143 = vpack.c.b16 %v801, %v795
    %v1144 = vpack.c.b16 %v802, %v796
    %v1145 = vpack.c.b16 %v803, %v797
    %v1146 = vpack.c.b16 %v804, %v798
    %v1147 = vpack.c.b16 %v805, %v799
    %v1148 = vpack.c.b16 %v812, %v806
    %v1149 = vpack.c.b16 %v813, %v807
    %v1150 = vpack.c.b16 %v814, %v808
    %v1151 = vpack.c.b16 %v815, %v809
    %v1152 = vpack.c.b16 %v816, %v810
    %v1153 = vpack.c.b16 %v817, %v811
    %v1154 = vpack.c.b16 %v824, %v818
    %v1155 = vpack.c.b16 %v825, %v819
    %v1156 = vpack.c.b16 %v826, %v820
    %v1157 = vpack.c.b16 %v827, %v821
    %v1158 = vpack.c.b16 %v828, %v822
    %v1159 = vpack.c.b16 %v829, %v823
    %v1160 = vpack.c.b16 %v836, %v830
    %v1161 = vpack.c.b16 %v837, %v831
    %v1162 = vpack.c.b16 %v838, %v832
    %v1163 = vpack.c.b16 %v839, %v833
    %v1164 = vpack.c.b16 %v840, %v834
    %v1165 = vpack.c.b16 %v841, %v835
    %v1166 = vpack.c.b16 %v848, %v842
    %v1167 = vpack.c.b16 %v849, %v843
    %v1168 = vpack.c.b16 %v850, %v844
    %v1169 = vpack.c.b16 %v851, %v845
    %v1170 = vpack.c.b16 %v852, %v846
    %v1171 = vpack.c.b16 %v853, %v847
    %v1172 = vpack.c.b16 %v860, %v854
    %v1173 = vpack.c.b16 %v861, %v855
    %v1174 = vpack.c.b16 %v862, %v856
    %v1175 = vpack.c.b16 %v863, %v857
    %v1176 = vpack.c.b16 %v864, %v858
    %v1177 = vpack.c.b16 %v865, %v859
    %v1178 = vpack.c.b16 %v872, %v866
    %v1179 = vpack.c.b16 %v873, %v867
    %v1180 = vpack.c.b16 %v874, %v868
    %v1181 = vpack.c.b16 %v875, %v869
    %v1182 = vpack.c.b16 %v876, %v870
    %v1183 = vpack.c.b16 %v877, %v871
    %v1184 = vpack.c.b16 %v884, %v878
    %v1185 = vpack.c.b16 %v885, %v879
    %v1186 = vpack.c.b16 %v886, %v880
    %v1187 = vpack.c.b16 %v887, %v881
    %v1188 = vpack.c.b16 %v888, %v882
    %v1189 = vpack.c.b16 %v889, %v883
    %v1190 = vpack.c.b16 %v896, %v890
    %v1191 = vpack.c.b16 %v897, %v891
    %v1192 = vpack.c.b16 %v898, %v892
    %v1193 = vpack.c.b16 %v899, %v893
    %v1194 = vpack.c.b16 %v900, %v894
    %v1195 = vpack.c.b16 %v901, %v895
    %v1196 = vpack.c.b16 %v908, %v902
    %v1197 = vpack.c.b16 %v909, %v903
    %v1198 = vpack.c.b16 %v910, %v904
    %v1199 = vpack.c.b16 %v911, %v905
    %v1200 = vpack.c.b16 %v912, %v906
    %v1201 = vpack.c.b16 %v913, %v907
    %v1202 = vpack.c.b16 %v920, %v914
    %v1203 = vpack.c.b16 %v921, %v915
    %v1204 = vpack.c.b16 %v922, %v916
    %v1205 = vpack.c.b16 %v923, %v917
    %v1206 = vpack.c.b16 %v924, %v918
    %v1207 = vpack.c.b16 %v925, %v919
    %v1208 = vpack.c.b16 %v932, %v926
    %v1209 = vpack.c.b16 %v933, %v927
    %v1210 = vpack.c.b16 %v934, %v928
    %v1211 = vpack.c.b16 %v935, %v929
    %v1212 = vpack.c.b16 %v936, %v930
    %v1213 = vpack.c.b16 %v937, %v931
    %v1214 = vpack.c.b16 %v944, %v938
    %v1215 = vpack.c.b16 %v945, %v939
    %v1216 = vpack.c.b16 %v946, %v940
    %v1217 = vpack.c.b16 %v947, %v941
    %v1218 = vpack.c.b16 %v948, %v942
    %v1219 = vpack.c.b16 %v949, %v943
    %v1220 = vpack.c.b16 %v956, %v950
    %v1221 = vpack.c.b16 %v957, %v951
    %v1222 = vpack.c.b16 %v958, %v952
    %v1223 = vpack.c.b16 %v959, %v953
    %v1224 = vpack.c.b16 %v960, %v954
    %v1225 = vpack.c.b16 %v961, %v955
    %v1226 = vpack.c.b16 %v968, %v962
    %v1227 = vpack.c.b16 %v969, %v963
    %v1228 = vpack.c.b16 %v970, %v964
    %v1229 = vpack.c.b16 %v971, %v965
    %v1230 = vpack.c.b16 %v972, %v966
    %v1231 = vpack.c.b16 %v973, %v967
    %v1232 = vpack.c.b16 %v980, %v974
    %v1233 = vpack.c.b16 %v981, %v975
    %v1234 = vpack.c.b16 %v982, %v976
    %v1235 = vpack.c.b16 %v983, %v977
    %v1236 = vpack.c.b16 %v984, %v978
    %v1237 = vpack.c.b16 %v985, %v979
    %v1238 = vpack.c.b16 %v992, %v986
    %v1239 = vpack.c.b16 %v993, %v987
    %v1240 = vpack.c.b16 %v994, %v988
    %v1241 = vpack.c.b16 %v995, %v989
    %v1242 = vpack.c.b16 %v996, %v990
    %v1243 = vpack.c.b16 %v997, %v991
    %v1244 = vpack.c.b16 %v1004, %v998
    %v1245 = vpack.c.b16 %v1005, %v999
    %v1246 = vpack.c.b16 %v1006, %v1000
    %v1247 = vpack.c.b16 %v1007, %v1001
    %v1248 = vpack.c.b16 %v1008, %v1002
    %v1249 = vpack.c.b16 %v1009, %v1003
    %v1250 = vpack.c.b16 %v1016, %v1010
    %v1251 = vpack.c.b16 %v1017, %v1011
    %v1252 = vpack.c.b16 %v1018, %v1012
    %v1253 = vpack.c.b16 %v1019, %v1013
    %v1254 = vpack.c.b16 %v1020, %v1014
    %v1255 = vpack.c.b16 %v1021, %v1015
    %v1256 = vpack.c.b16 %v1028, %v1022
    %v1257 = vpack.c.b16 %v1029, %v1023
    %v1258 = vpack.c.b16 %v1030, %v1024
    %v1259 = vpack.c.b16 %v1031, %v1025
    %v1260 = vpack.c.b16 %v1032, %v1026
    %v1261 = vpack.c.b16 %v1033, %v1027
    %v1262 = vpack.c.b16 %v1040, %v1034
    %v1263 = vpack.c.b16 %v1041, %v1035
    %v1264 = vpack.c.b16 %v1042, %v1036
    %v1265 = vpack.c.b16 %v1043, %v1037
    %v1266 = vpack.c.b16 %v1044, %v1038
    %v1267 = vpack.c.b16 %v1045, %v1039
    %v1268 = vpack.c.b16 %v1052, %v1046
    %v1269 = vpack.c.b16 %v1053, %v1047
    %v1270 = vpack.c.b16 %v1054, %v1048
    %v1271 = vpack.c.b16 %v1055, %v1049
    %v1272 = vpack.c.b16 %v1056, %v1050
    %v1273 = vpack.c.b16 %v1057, %v1051
    %v1274 = vpack.c.b16 %v1064, %v1058
    %v1275 = vpack.c.b16 %v1065, %v1059
    %v1276 = vpack.c.b16 %v1066, %v1060
    %v1277 = vpack.c.b16 %v1067, %v1061
    %v1278 = vpack.c.b16 %v1068, %v1062
    %v1279 = vpack.c.b16 %v1069, %v1063
    %v1280 = vpack.c.b16 %v1076, %v1070
    %v1281 = vpack.c.b16 %v1077, %v1071
    %v1282 = vpack.c.b16 %v1078, %v1072
    %v1283 = vpack.c.b16 %v1079, %v1073
    %v1284 = vpack.c.b16 %v1080, %v1074
    %v1285 = vpack.c.b16 %v1081, %v1075
    %v1286 = vpack.c.b16 %v1088, %v1082
    %v1287 = vpack.c.b16 %v1089, %v1083
    %v1288 = vpack.c.b16 %v1090, %v1084
    %v1289 = vpack.c.b16 %v1091, %v1085
    %v1290 = vpack.c.b16 %v1092, %v1086
    %v1291 = vpack.c.b16 %v1093, %v1087
    %v1292 = vpack.c.b16 %v1100, %v1094
    %v1293 = vpack.c.b16 %v1101, %v1095
    %v1294 = vpack.c.b16 %v1102, %v1096
    %v1295 = vpack.c.b16 %v1103, %v1097
    %v1296 = vpack.c.b16 %v1104, %v1098
    %v1297 = vpack.c.b16 %v1105, %v1099
    %1490 = vmatprep.subr.bf16.mxu0 %v1107
    %1491 = vmatpush1.bf16.msra.mxu0 %v1106
    %1492 = vmatprep.subr.bf16.mxu0 %v1113
    %1493 = vmatpush1.bf16.msra.mxu0 %v1112
    %1494 = vmatprep.subr.bf16.mxu0 %v1119
    %1495 = vmatpush1.bf16.msra.mxu0 %v1118
    %1496 = vmatprep.subr.bf16.mxu0 %v1125
    %1497 = vmatpush1.bf16.msra.mxu0 %v1124
    %1498 = vmatprep.subr.bf16.mxu0 %v1131
    %1499 = vmatpush1.bf16.msra.mxu0 %v1130
    %1500 = vmatprep.subr.bf16.mxu0 %v1137
    %1501 = vmatpush1.bf16.msra.mxu0 %v1136
    %1502 = vmatprep.subr.bf16.mxu0 %v1143
    %1503 = vmatpush1.bf16.msra.mxu0 %v1142
    %1504 = vmatprep.subr.bf16.mxu0 %v1149
    %1505 = vmatpush1.bf16.msra.mxu0 %v1148
    %1506 = vmatprep.subr.bf16.mxu0 %v1155
    %1507 = vmatpush1.bf16.msra.mxu0 %v1154
    %1508 = vmatprep.subr.bf16.mxu0 %v1161
    %1509 = vmatpush1.bf16.msra.mxu0 %v1160
    %1510 = vmatprep.subr.bf16.mxu0 %v1167
    %1511 = vmatpush1.bf16.msra.mxu0 %v1166
    %1512 = vmatprep.subr.bf16.mxu0 %v1173
    %1513 = vmatpush1.bf16.msra.mxu0 %v1172
    %1514 = vmatprep.subr.bf16.mxu0 %v1179
    %1515 = vmatpush1.bf16.msra.mxu0 %v1178
    %1516 = vmatprep.subr.bf16.mxu0 %v1185
    %1517 = vmatpush1.bf16.msra.mxu0 %v1184
    %1518 = vmatprep.subr.bf16.mxu0 %v1191
    %1519 = vmatpush1.bf16.msra.mxu0 %v1190
    %1520 = vmatprep.subr.bf16.mxu0 %v1197
    %1521 = vmatpush1.bf16.msra.mxu0 %v1196
    %1522 = vmatprep.mubr.bf16.mxu0 %v303
    %1523 = vmatmul.mubr.bf16.gmra.mrb[0].mxu0 %v302
    %v1524 = vpop.f32.mrb[0].mxu0
    %v1525 = vadd.f32 %v503, %v1524
    %v1526 = vpop.f32.mrb[0].mxu0
    %v1527 = vadd.f32 %v507, %v1526
    %v1528 = vpop.f32.mrb[0].mxu0
    %v1529 = vadd.f32 %v503, %v1528
    %v1530 = vpop.f32.mrb[0].mxu0
    %v1531 = vadd.f32 %v507, %v1530
    %1532 = vdwg.mxu0
    %1533 = vmatprep.subr.bf16.mxu0 %v1203
    %1534 = vmatpush1.bf16.msra.mxu0 %v1202
    %1535 = vmatprep.subr.bf16.mxu0 %v1209
    %1536 = vmatpush1.bf16.msra.mxu0 %v1208
    %1537 = vmatprep.subr.bf16.mxu0 %v1215
    %1538 = vmatpush1.bf16.msra.mxu0 %v1214
    %1539 = vmatprep.subr.bf16.mxu0 %v1221
    %1540 = vmatpush1.bf16.msra.mxu0 %v1220
    %1541 = vmatprep.subr.bf16.mxu0 %v1227
    %1542 = vmatpush1.bf16.msra.mxu0 %v1226
    %1543 = vmatprep.subr.bf16.mxu0 %v1233
    %1544 = vmatpush1.bf16.msra.mxu0 %v1232
    %1545 = vmatprep.subr.bf16.mxu0 %v1239
    %1546 = vmatpush1.bf16.msra.mxu0 %v1238
    %1547 = vmatprep.subr.bf16.mxu0 %v1245
    %1548 = vmatpush1.bf16.msra.mxu0 %v1244
    %1549 = vmatprep.subr.bf16.mxu0 %v1251
    %1550 = vmatpush1.bf16.msra.mxu0 %v1250
    %1551 = vmatprep.subr.bf16.mxu0 %v1257
    %1552 = vmatpush1.bf16.msra.mxu0 %v1256
    %1553 = vmatprep.subr.bf16.mxu0 %v1263
    %1554 = vmatpush1.bf16.msra.mxu0 %v1262
    %1555 = vmatprep.subr.bf16.mxu0 %v1269
    %1556 = vmatpush1.bf16.msra.mxu0 %v1268
    %1557 = vmatprep.subr.bf16.mxu0 %v1275
    %1558 = vmatpush1.bf16.msra.mxu0 %v1274
    %1559 = vmatprep.subr.bf16.mxu0 %v1281
    %1560 = vmatpush1.bf16.msra.mxu0 %v1280
    %1561 = vmatprep.subr.bf16.mxu0 %v1287
    %1562 = vmatpush1.bf16.msra.mxu0 %v1286
    %1563 = vmatprep.subr.bf16.mxu0 %v1293
    %1564 = vmatpush1.bf16.msra.mxu0 %v1292
    %1565 = vmatprep.mubr.bf16.mxu0 %v305
    %1566 = vmatmul.mubr.bf16.gmra.mrb[0].mxu0 %v304
    %v1567 = vpop.f32.mrb[0].mxu0
    %v1568 = vadd.f32 %v1525, %v1567
    %v1569 = vpop.f32.mrb[0].mxu0
    %v1570 = vadd.f32 %v1527, %v1569
    %v1571 = vpop.f32.mrb[0].mxu0
    %v1572 = vadd.f32 %v1529, %v1571
    %v1573 = vpop.f32.mrb[0].mxu0
    %v1574 = vadd.f32 %v1531, %v1573
    %1575 = vdwg.mxu0
    %1576 = vmatprep.subr.bf16.mxu0 %v1109
    %1577 = vmatpush1.bf16.msra.mxu0 %v1108
    %1578 = vmatprep.subr.bf16.mxu0 %v1115
    %1579 = vmatpush1.bf16.msra.mxu0 %v1114
    %1580 = vmatprep.subr.bf16.mxu0 %v1121
    %1581 = vmatpush1.bf16.msra.mxu0 %v1120
    %1582 = vmatprep.subr.bf16.mxu0 %v1127
    %1583 = vmatpush1.bf16.msra.mxu0 %v1126
    %1584 = vmatprep.subr.bf16.mxu0 %v1133
    %1585 = vmatpush1.bf16.msra.mxu0 %v1132
    %1586 = vmatprep.subr.bf16.mxu0 %v1139
    %1587 = vmatpush1.bf16.msra.mxu0 %v1138
    %1588 = vmatprep.subr.bf16.mxu0 %v1145
    %1589 = vmatpush1.bf16.msra.mxu0 %v1144
    %1590 = vmatprep.subr.bf16.mxu0 %v1151
    %1591 = vmatpush1.bf16.msra.mxu0 %v1150
    %1592 = vmatprep.subr.bf16.mxu0 %v1157
    %1593 = vmatpush1.bf16.msra.mxu0 %v1156
    %1594 = vmatprep.subr.bf16.mxu0 %v1163
    %1595 = vmatpush1.bf16.msra.mxu0 %v1162
    %1596 = vmatprep.subr.bf16.mxu0 %v1169
    %1597 = vmatpush1.bf16.msra.mxu0 %v1168
    %1598 = vmatprep.subr.bf16.mxu0 %v1175
    %1599 = vmatpush1.bf16.msra.mxu0 %v1174
    %1600 = vmatprep.subr.bf16.mxu0 %v1181
    %1601 = vmatpush1.bf16.msra.mxu0 %v1180
    %1602 = vmatprep.subr.bf16.mxu0 %v1187
    %1603 = vmatpush1.bf16.msra.mxu0 %v1186
    %1604 = vmatprep.subr.bf16.mxu0 %v1193
    %1605 = vmatpush1.bf16.msra.mxu0 %v1192
    %1606 = vmatprep.subr.bf16.mxu0 %v1199
    %1607 = vmatpush1.bf16.msra.mxu0 %v1198
    %1608 = vmatprep.mubr.bf16.mxu0 %v303
    %1609 = vmatmul.mubr.bf16.gmra.mrb[0].mxu0 %v302
    %v1610 = vpop.f32.mrb[0].mxu0
    %v1611 = vadd.f32 %v511, %v1610
    %v1612 = vpop.f32.mrb[0].mxu0
    %v1613 = vadd.f32 %v515, %v1612
    %v1614 = vpop.f32.mrb[0].mxu0
    %v1615 = vadd.f32 %v511, %v1614
    %v1616 = vpop.f32.mrb[0].mxu0
    %v1617 = vadd.f32 %v515, %v1616
    %1618 = vdwg.mxu0
    %1619 = vmatprep.subr.bf16.mxu0 %v1205
    %1620 = vmatpush1.bf16.msra.mxu0 %v1204
    %1621 = vmatprep.subr.bf16.mxu0 %v1211
    %1622 = vmatpush1.bf16.msra.mxu0 %v1210
    %1623 = vmatprep.subr.bf16.mxu0 %v1217
    %1624 = vmatpush1.bf16.msra.mxu0 %v1216
    %1625 = vmatprep.subr.bf16.mxu0 %v1223
    %1626 = vmatpush1.bf16.msra.mxu0 %v1222
    %1627 = vmatprep.subr.bf16.mxu0 %v1229
    %1628 = vmatpush1.bf16.msra.mxu0 %v1228
    %1629 = vmatprep.subr.bf16.mxu0 %v1235
    %1630 = vmatpush1.bf16.msra.mxu0 %v1234
    %1631 = vmatprep.subr.bf16.mxu0 %v1241
    %1632 = vmatpush1.bf16.msra.mxu0 %v1240
    %1633 = vmatprep.subr.bf16.mxu0 %v1247
    %1634 = vmatpush1.bf16.msra.mxu0 %v1246
    %1635 = vmatprep.subr.bf16.mxu0 %v1253
    %1636 = vmatpush1.bf16.msra.mxu0 %v1252
    %1637 = vmatprep.subr.bf16.mxu0 %v1259
    %1638 = vmatpush1.bf16.msra.mxu0 %v1258
    %1639 = vmatprep.subr.bf16.mxu0 %v1265
    %1640 = vmatpush1.bf16.msra.mxu0 %v1264
    %1641 = vmatprep.subr.bf16.mxu0 %v1271
    %1642 = vmatpush1.bf16.msra.mxu0 %v1270
    %1643 = vmatprep.subr.bf16.mxu0 %v1277
    %1644 = vmatpush1.bf16.msra.mxu0 %v1276
    %1645 = vmatprep.subr.bf16.mxu0 %v1283
    %1646 = vmatpush1.bf16.msra.mxu0 %v1282
    %1647 = vmatprep.subr.bf16.mxu0 %v1289
    %1648 = vmatpush1.bf16.msra.mxu0 %v1288
    %1649 = vmatprep.subr.bf16.mxu0 %v1295
    %1650 = vmatpush1.bf16.msra.mxu0 %v1294
    %1651 = vmatprep.mubr.bf16.mxu0 %v305
    %1652 = vmatmul.mubr.bf16.gmra.mrb[0].mxu0 %v304
    %v1653 = vpop.f32.mrb[0].mxu0
    %v1654 = vadd.f32 %v1611, %v1653
    %v1655 = vpop.f32.mrb[0].mxu0
    %v1656 = vadd.f32 %v1613, %v1655
    %v1657 = vpop.f32.mrb[0].mxu0
    %v1658 = vadd.f32 %v1615, %v1657
    %v1659 = vpop.f32.mrb[0].mxu0
    %v1660 = vadd.f32 %v1617, %v1659
    %1661 = vdwg.mxu0
    %1662 = vmatprep.subr.bf16.mxu0 %v1111
    %1663 = vmatpush1.bf16.msra.mxu0 %v1110
    %1664 = vmatprep.subr.bf16.mxu0 %v1117
    %1665 = vmatpush1.bf16.msra.mxu0 %v1116
    %1666 = vmatprep.subr.bf16.mxu0 %v1123
    %1667 = vmatpush1.bf16.msra.mxu0 %v1122
    %1668 = vmatprep.subr.bf16.mxu0 %v1129
    %1669 = vmatpush1.bf16.msra.mxu0 %v1128
    %1670 = vmatprep.subr.bf16.mxu0 %v1135
    %1671 = vmatpush1.bf16.msra.mxu0 %v1134
    %1672 = vmatprep.subr.bf16.mxu0 %v1141
    %1673 = vmatpush1.bf16.msra.mxu0 %v1140
    %1674 = vmatprep.subr.bf16.mxu0 %v1147
    %1675 = vmatpush1.bf16.msra.mxu0 %v1146
    %1676 = vmatprep.subr.bf16.mxu0 %v1153
    %1677 = vmatpush1.bf16.msra.mxu0 %v1152
    %1678 = vmatprep.subr.bf16.mxu0 %v1159
    %1679 = vmatpush1.bf16.msra.mxu0 %v1158
    %1680 = vmatprep.subr.bf16.mxu0 %v1165
    %1681 = vmatpush1.bf16.msra.mxu0 %v1164
    %1682 = vmatprep.subr.bf16.mxu0 %v1171
    %1683 = vmatpush1.bf16.msra.mxu0 %v1170
    %1684 = vmatprep.subr.bf16.mxu0 %v1177
    %1685 = vmatpush1.bf16.msra.mxu0 %v1176
    %1686 = vmatprep.subr.bf16.mxu0 %v1183
    %1687 = vmatpush1.bf16.msra.mxu0 %v1182
    %1688 = vmatprep.subr.bf16.mxu0 %v1189
    %1689 = vmatpush1.bf16.msra.mxu0 %v1188
    %1690 = vmatprep.subr.bf16.mxu0 %v1195
    %1691 = vmatpush1.bf16.msra.mxu0 %v1194
    %1692 = vmatprep.subr.bf16.mxu0 %v1201
    %1693 = vmatpush1.bf16.msra.mxu0 %v1200
    %1694 = vmatprep.mubr.bf16.mxu0 %v303
    %1695 = vmatmul.mubr.bf16.gmra.mrb[0].mxu0 %v302
    %v1696 = vpop.f32.mrb[0].mxu0
    %v1697 = vadd.f32 %v519, %v1696
    %v1698 = vpop.f32.mrb[0].mxu0
    %v1699 = vadd.f32 %v523, %v1698
    %v1700 = vpop.f32.mrb[0].mxu0
    %v1701 = vadd.f32 %v519, %v1700
    %v1702 = vpop.f32.mrb[0].mxu0
    %v1703 = vadd.f32 %v523, %v1702
    %1704 = vdwg.mxu0
    %1705 = vmatprep.subr.bf16.mxu0 %v1207
    %1706 = vmatpush1.bf16.msra.mxu0 %v1206
    %1707 = vmatprep.subr.bf16.mxu0 %v1213
    %1708 = vmatpush1.bf16.msra.mxu0 %v1212
    %1709 = vmatprep.subr.bf16.mxu0 %v1219
    %1710 = vmatpush1.bf16.msra.mxu0 %v1218
    %1711 = vmatprep.subr.bf16.mxu0 %v1225
    %1712 = vmatpush1.bf16.msra.mxu0 %v1224
    %1713 = vmatprep.subr.bf16.mxu0 %v1231
    %1714 = vmatpush1.bf16.msra.mxu0 %v1230
    %1715 = vmatprep.subr.bf16.mxu0 %v1237
    %1716 = vmatpush1.bf16.msra.mxu0 %v1236
    %1717 = vmatprep.subr.bf16.mxu0 %v1243
    %1718 = vmatpush1.bf16.msra.mxu0 %v1242
    %1719 = vmatprep.subr.bf16.mxu0 %v1249
    %1720 = vmatpush1.bf16.msra.mxu0 %v1248
    %1721 = vmatprep.subr.bf16.mxu0 %v1255
    %1722 = vmatpush1.bf16.msra.mxu0 %v1254
    %1723 = vmatprep.subr.bf16.mxu0 %v1261
    %1724 = vmatpush1.bf16.msra.mxu0 %v1260
    %1725 = vmatprep.subr.bf16.mxu0 %v1267
    %1726 = vmatpush1.bf16.msra.mxu0 %v1266
    %1727 = vmatprep.subr.bf16.mxu0 %v1273
    %1728 = vmatpush1.bf16.msra.mxu0 %v1272
    %1729 = vmatprep.subr.bf16.mxu0 %v1279
    %1730 = vmatpush1.bf16.msra.mxu0 %v1278
    %1731 = vmatprep.subr.bf16.mxu0 %v1285
    %1732 = vmatpush1.bf16.msra.mxu0 %v1284
    %1733 = vmatprep.subr.bf16.mxu0 %v1291
    %1734 = vmatpush1.bf16.msra.mxu0 %v1290
    %1735 = vmatprep.subr.bf16.mxu0 %v1297
    %1736 = vmatpush1.bf16.msra.mxu0 %v1296
    %1737 = vmatprep.mubr.bf16.mxu0 %v305
    %1738 = vmatmul.mubr.bf16.gmra.mrb[0].mxu0 %v304
    %v1739 = vpop.f32.mrb[0].mxu0
    %v1740 = vadd.f32 %v1697, %v1739
    %v1741 = vpop.f32.mrb[0].mxu0
    %v1742 = vadd.f32 %v1699, %v1741
    %v1743 = vpop.f32.mrb[0].mxu0
    %v1744 = vadd.f32 %v1701, %v1743
    %v1745 = vpop.f32.mrb[0].mxu0
    %v1746 = vadd.f32 %v1703, %v1745
    %1747 = vdwg.mxu0
    %v1748 = vmax.f32 %v1568, 0.0
    %v1749 = vmax.f32 %v1570, 0.0
    %v1750 = vmax.f32 %v1654, 0.0
    %v1751 = vmax.f32 %v1656, 0.0
    %v1752 = vmax.f32 %v1740, 0.0
    %v1753 = vmax.f32 %v1742, 0.0
    %v1754 = vmax.f32 %v1572, 0.0
    %v1755 = vmax.f32 %v1574, 0.0
    %v1756 = vmax.f32 %v1658, 0.0
    %v1757 = vmax.f32 %v1660, 0.0
    %v1758 = vmax.f32 %v1744, 0.0
    %v1759 = vmax.f32 %v1746, 0.0
    %v1760 = vmax.f32 %v1748, %v1749
    %v1761 = vmax.f32 %v1754, %v1755
    %v1762 = vmax.f32 %v1750, %v1751
    %v1763 = vmax.f32 %v1756, %v1757
    %v1764 = vmax.f32 %v1752, %v1753
    %v1765 = vmax.f32 %v1758, %v1759
    %v1766 = vmax.f32 %v1760, %v1762
    %v1767 = vmax.f32 %v1761, %v1763
    %v1768 = vmax.f32 %v1766, %v1764
    %v1769 = vmax.f32 %v1767, %v1765
    %v1770 = vpack.c.bf16 %v1769, %v1768
    %v1771 = vld [vmem:[#allocation7] sm:$0xff]
    %v1772 = vld [vmem:[#allocation7 + $0x8] sm:$0xff]
    %v1773 = vld [vmem:[#allocation7 + $0x10] sm:$0xff]
    %v1774 = vld [vmem:[#allocation7 + $0x18] sm:$0xff]
    %v1775 = vld [vmem:[#allocation7 + $0x20] sm:$0xff]
    %v1776 = vld [vmem:[#allocation7 + $0x28] sm:$0xff]
    %v1777 = vld [vmem:[#allocation7 + $0x30] sm:$0xff]
    %v1778 = vld [vmem:[#allocation7 + $0x38] sm:$0xff]
    %v1779 = vld [vmem:[#allocation7 + $0x40] sm:$0xff]
    %v1780 = vld [vmem:[#allocation7 + $0x48] sm:$0xff]
    %v1781 = vld [vmem:[#allocation7 + $0x50] sm:$0xff]
    %v1782 = vld [vmem:[#allocation7 + $0x58] sm:$0xff]
    %v1783 = vld [vmem:[#allocation7 + $0x60] sm:$0xff]
    %v1784 = vld [vmem:[#allocation7 + $0x68] sm:$0xff]
    %v1785 = vld [vmem:[#allocation7 + $0x70] sm:$0xff]
    %v1786 = vld [vmem:[#allocation7 + $0x78] sm:$0xff]
    %v1787 = vld [vmem:[%s5] sm:$0x3]
    %v1789 = vlaneseq
    %v1790 = vshrl.u32 %v1789, 7
    %v1791 = vsub.s32 0, %v1790
    %v1792 = vrot.slane %v1787, %v1791
    %v1793 = vlaneseq
    %v1794 = vshrl.u32 %v1793, 7
    %v1795 = vsub.s32 1, %v1794
    %v1796 = vrot.slane %v1787, %v1795
    %v1815 = vunpack.c.l.b16 %v1771
    %v1816 = vunpack.c.h.b16 %v1771
    %v1817 = vunpack.c.l.b16 %v1772
    %v1818 = vunpack.c.h.b16 %v1772
    %v1819 = vunpack.c.l.b16 %v1773
    %v1820 = vunpack.c.h.b16 %v1773
    %v1821 = vunpack.c.l.b16 %v1774
    %v1822 = vunpack.c.h.b16 %v1774
    %v1823 = vunpack.c.l.b16 %v1775
    %v1824 = vunpack.c.h.b16 %v1775
    %v1825 = vunpack.c.l.b16 %v1776
    %v1826 = vunpack.c.h.b16 %v1776
    %v1827 = vunpack.c.l.b16 %v1777
    %v1828 = vunpack.c.h.b16 %v1777
    %v1829 = vunpack.c.l.b16 %v1778
    %v1830 = vunpack.c.h.b16 %v1778
    %v1831 = vunpack.c.l.b16 %v1779
    %v1832 = vunpack.c.h.b16 %v1779
    %v1833 = vunpack.c.l.b16 %v1780
    %v1834 = vunpack.c.h.b16 %v1780
    %v1835 = vunpack.c.l.b16 %v1781
    %v1836 = vunpack.c.h.b16 %v1781
    %v1837 = vunpack.c.l.b16 %v1782
    %v1838 = vunpack.c.h.b16 %v1782
    %v1839 = vunpack.c.l.b16 %v1783
    %v1840 = vunpack.c.h.b16 %v1783
    %v1841 = vunpack.c.l.b16 %v1784
    %v1842 = vunpack.c.h.b16 %v1784
    %v1843 = vunpack.c.l.b16 %v1785
    %v1844 = vunpack.c.h.b16 %v1785
    %v1845 = vunpack.c.l.b16 %v1786
    %v1846 = vunpack.c.h.b16 %v1786
    %v1847 = vpack.c.b16 %v1817, %v1815
    %v1848 = vpack.c.b16 %v1818, %v1816
    %v1849 = vpack.c.b16 %v1821, %v1819
    %v1850 = vpack.c.b16 %v1822, %v1820
    %v1851 = vpack.c.b16 %v1825, %v1823
    %v1852 = vpack.c.b16 %v1826, %v1824
    %v1853 = vpack.c.b16 %v1829, %v1827
    %v1854 = vpack.c.b16 %v1830, %v1828
    %v1855 = vpack.c.b16 %v1833, %v1831
    %v1856 = vpack.c.b16 %v1834, %v1832
    %v1857 = vpack.c.b16 %v1837, %v1835
    %v1858 = vpack.c.b16 %v1838, %v1836
    %v1859 = vpack.c.b16 %v1841, %v1839
    %v1860 = vpack.c.b16 %v1842, %v1840
    %v1861 = vpack.c.b16 %v1845, %v1843
    %v1862 = vpack.c.b16 %v1846, %v1844
    %1879 = vmatprep.subr.bf16.mxu0 %v1848
    %1880 = vmatpush1.bf16.msra.mxu0 %v1847
    %1881 = vmatprep.subr.bf16.mxu0 %v1850
    %1882 = vmatpush1.bf16.msra.mxu0 %v1849
    %1883 = vmatprep.subr.bf16.mxu0 %v1852
    %1884 = vmatpush1.bf16.msra.mxu0 %v1851
    %1885 = vmatprep.subr.bf16.mxu0 %v1854
    %1886 = vmatpush1.bf16.msra.mxu0 %v1853
    %1887 = vmatprep.subr.bf16.mxu0 %v1856
    %1888 = vmatpush1.bf16.msra.mxu0 %v1855
    %1889 = vmatprep.subr.bf16.mxu0 %v1858
    %1890 = vmatpush1.bf16.msra.mxu0 %v1857
    %1891 = vmatprep.subr.bf16.mxu0 %v1860
    %1892 = vmatpush1.bf16.msra.mxu0 %v1859
    %1893 = vmatprep.subr.bf16.mxu0 %v1862
    %1894 = vmatpush1.bf16.msra.mxu0 %v1861
    %1895 = vmatprep.subr.bf16.mxu0 0
    %1896 = vmatpush1.bf16.msra.mxu0 0
    %1897 = vmatprep.subr.bf16.mxu0 0
    %1898 = vmatpush1.bf16.msra.mxu0 0
    %1899 = vmatprep.subr.bf16.mxu0 0
    %1900 = vmatpush1.bf16.msra.mxu0 0
    %1901 = vmatprep.subr.bf16.mxu0 0
    %1902 = vmatpush1.bf16.msra.mxu0 0
    %1903 = vmatprep.subr.bf16.mxu0 0
    %1904 = vmatpush1.bf16.msra.mxu0 0
    %1905 = vmatprep.subr.bf16.mxu0 0
    %1906 = vmatpush1.bf16.msra.mxu0 0
    %1907 = vmatprep.subr.bf16.mxu0 0
    %1908 = vmatpush1.bf16.msra.mxu0 0
    %1909 = vmatprep.subr.bf16.mxu0 0
    %1910 = vmatpush1.bf16.msra.mxu0 0
    %1911 = vmatprep.mubr.bf16.mxu0 0
    %1912 = vmatmul.mubr.bf16.gmra.mrb[0].mxu0 %v1770
    %v1913 = vpop.f32.mrb[0].mxu0
    %v1914 = vadd.f32 %v1792, %v1913
    %v1915 = vpop.f32.mrb[0].mxu0
    %v1916 = vadd.f32 %v1796, %v1915
    %v1917 = vpop.f32.mrb[0].mxu0
    %v1918 = vadd.f32 %v1792, %v1917
    %v1919 = vpop.f32.mrb[0].mxu0
    %v1920 = vadd.f32 %v1796, %v1919
    %1921 = vdwg.mxu0
    %v1922 = vmax.f32 %v1914, 0.0
    %v1923 = vmax.f32 %v1918, 0.0
    %v1924 = vxor.u32 %v1916, 2147483648
    %v1925 = vxor.u32 %v1920, 2147483648
    %v1926 = vmul.f32 %v1924, 1.442695
    %v1927 = vpow.pop %v1926
    %v1928 = vmul.f32 %v1925, 1.442695
    %v1929 = vpow.pop %v1928
    %v1930 = vadd.f32 %v1927, 1.0
    %v1931 = vadd.f32 %v1929, 1.0
    %v1932 = vrcp.pop %v1930
    %v1933 = vmul.f32 1.0, %v1932
    %v1934 = vrcp.pop %v1931
    %v1935 = vmul.f32 1.0, %v1934
    %v1936 = vmul.f32 %v1933, %v1922
    %v1937 = vmul.f32 %v1935, %v1923
    %v1938 = vsub.f32 1.0, %v1933
    %v1939 = vsub.f32 1.0, %v1935
    %v1940 = vmul.f32 %v1938, %v1768
    %v1941 = vmul.f32 %v1939, %v1769
    %v1942 = vadd.f32 %v1936, %v1940
    %v1943 = vadd.f32 %v1937, %v1941
    %v1944 = vpack.c.bf16 %v1943, %v1942
    %v1945 = vld [vmem:[#allocation9] sm:$0xf]
    %v1946 = vld [vmem:[#allocation9 + $0x4] sm:$0xf]
    %v1947 = vld [vmem:[#allocation9 + $0x8] sm:$0xf]
    %v1948 = vld [vmem:[#allocation9 + $0xc] sm:$0xf]
    %v1949 = vld [vmem:[#allocation9 + $0x10] sm:$0xf]
    %v1950 = vld [vmem:[#allocation9 + $0x14] sm:$0xf]
    %v1951 = vld [vmem:[#allocation9 + $0x18] sm:$0xf]
    %v1952 = vld [vmem:[#allocation9 + $0x1c] sm:$0xf]
    %v1953 = vld [vmem:[#allocation9 + $0x20] sm:$0xf]
    %v1954 = vld [vmem:[#allocation9 + $0x24] sm:$0xf]
    %v1955 = vld [vmem:[#allocation9 + $0x28] sm:$0xf]
    %v1956 = vld [vmem:[#allocation9 + $0x2c] sm:$0xf]
    %v1957 = vld [vmem:[#allocation9 + $0x30] sm:$0xf]
    %v1958 = vld [vmem:[#allocation9 + $0x34] sm:$0xf]
    %v1959 = vld [vmem:[#allocation9 + $0x38] sm:$0xf]
    %v1960 = vld [vmem:[#allocation9 + $0x3c] sm:$0xf]
    %v1961 = vld [vmem:[%s7] sm:$0x1]
    %v1963 = vlaneseq
    %v1964 = vshrl.u32 %v1963, 7
    %v1965 = vsub.s32 0, %v1964
    %v1966 = vrot.slane %v1961, %v1965
    %v1984 = vunpack.c.l.b16 %v1945
    %v1985 = vunpack.c.l.b16 %v1946
    %v1986 = vunpack.c.l.b16 %v1947
    %v1987 = vunpack.c.l.b16 %v1948
    %v1988 = vunpack.c.l.b16 %v1949
    %v1989 = vunpack.c.l.b16 %v1950
    %v1990 = vunpack.c.l.b16 %v1951
    %v1991 = vunpack.c.l.b16 %v1952
    %v1992 = vunpack.c.l.b16 %v1953
    %v1993 = vunpack.c.l.b16 %v1954
    %v1994 = vunpack.c.l.b16 %v1955
    %v1995 = vunpack.c.l.b16 %v1956
    %v1996 = vunpack.c.l.b16 %v1957
    %v1997 = vunpack.c.l.b16 %v1958
    %v1998 = vunpack.c.l.b16 %v1959
    %v1999 = vunpack.c.l.b16 %v1960
    %v2000 = vpack.c.b16 %v1985, %v1984
    %v2001 = vpack.c.b16 %v1987, %v1986
    %v2002 = vpack.c.b16 %v1989, %v1988
    %v2003 = vpack.c.b16 %v1991, %v1990
    %v2004 = vpack.c.b16 %v1993, %v1992
    %v2005 = vpack.c.b16 %v1995, %v1994
    %v2006 = vpack.c.b16 %v1997, %v1996
    %v2007 = vpack.c.b16 %v1999, %v1998
    %2016 = vmatprep.subr.bf16.mxu0 0
    %2017 = vmatpush1.bf16.msra.mxu0 %v2000
    %2018 = vmatprep.subr.bf16.mxu0 0
    %2019 = vmatpush1.bf16.msra.mxu0 %v2001
    %2020 = vmatprep.subr.bf16.mxu0 0
    %2021 = vmatpush1.bf16.msra.mxu0 %v2002
    %2022 = vmatprep.subr.bf16.mxu0 0
    %2023 = vmatpush1.bf16.msra.mxu0 %v2003
    %2024 = vmatprep.subr.bf16.mxu0 0
    %2025 = vmatpush1.bf16.msra.mxu0 %v2004
    %2026 = vmatprep.subr.bf16.mxu0 0
    %2027 = vmatpush1.bf16.msra.mxu0 %v2005
    %2028 = vmatprep.subr.bf16.mxu0 0
    %2029 = vmatpush1.bf16.msra.mxu0 %v2006
    %2030 = vmatprep.subr.bf16.mxu0 0
    %2031 = vmatpush1.bf16.msra.mxu0 %v2007
    %2032 = vmatprep.subr.bf16.mxu0 0
    %2033 = vmatpush1.bf16.msra.mxu0 0
    %2034 = vmatprep.subr.bf16.mxu0 0
    %2035 = vmatpush1.bf16.msra.mxu0 0
    %2036 = vmatprep.subr.bf16.mxu0 0
    %2037 = vmatpush1.bf16.msra.mxu0 0
    %2038 = vmatprep.subr.bf16.mxu0 0
    %2039 = vmatpush1.bf16.msra.mxu0 0
    %2040 = vmatprep.subr.bf16.mxu0 0
    %2041 = vmatpush1.bf16.msra.mxu0 0
    %2042 = vmatprep.subr.bf16.mxu0 0
    %2043 = vmatpush1.bf16.msra.mxu0 0
    %2044 = vmatprep.subr.bf16.mxu0 0
    %2045 = vmatpush1.bf16.msra.mxu0 0
    %2046 = vmatprep.subr.bf16.mxu0 0
    %2047 = vmatpush1.bf16.msra.mxu0 0
    %2048 = vmatprep.mubr.bf16.mxu0 0
    %2049 = vmatmul.mubr.bf16.gmra.mrb[0].mxu0 %v1944
    %v2050 = vpop.f32.mrb[0].mxu0
    %v2051 = vadd.f32 %v1966, %v2050
    %v2052 = vpop.f32.mrb[0].mxu0
    %v2053 = vpop.f32.mrb[0].mxu0
    %v2054 = vadd.f32 %v1966, %v2053
    %v2055 = vpop.f32.mrb[0].mxu0
    %2056 = vdwg.mxu0
    %v2057 = vpack.c.bf16 %v2054, %v2051
    %v2059 = vunpack.c.l.b16 %v2057
    %v2060 = vunpack.c.h.b16 %v2057
    %v2061 = vpack.c.b16 %v2059, %v2059
    %v2062 = vpack.c.b16 %v2060, %v2060
    %2065 = vst [vmem:[%s8] sm:$0xf] %v2061
    %2066 = vst [vmem:[%s8 + $0x4] sm:$0xf] %v2062
    // Predicated region
    $region54: #{elmo_word_level.1} parent=1 // pred_check
      _
    $region55: #{elmo_word_level.1} parent=1 // pred_check_branch
      %2068 = sbr.rel (0) target = $region57
    $region56: #{elmo_word_level.1} parent=1 // pred_region
      _
    $region57: #{elmo_word_level.1} parent=1 // pred_fallthru
      _
    // Predicated region
    $region58: #{elmo_word_level.1} parent=1 // pred_check
      _
    $region59: #{elmo_word_level.1} parent=1 // pred_check_branch
      %2070 = sbr.rel (0) target = $region61
    $region60: #{elmo_word_level.1} parent=1 // pred_region
      _
    $region61: #{elmo_word_level.1} parent=1 // pred_fallthru
      _
    %2071 = vsyncpa [#allocation3], 1
    %2072 = vsyncpa [#allocation5], 1
    %2073 = vsyncpa [#allocation8], 1

</llo_original>
